<compile_context>
chip_gen: v7x
topology: tpu7x:2x2x1
jax: 0.10.0
libtpu: 0.0.40
codegen_flags: <defaults>
</compile_context>

<pallas_src>
import functools
import math

import jax
import jax.numpy as jnp
from jax import lax
from jax.experimental import pallas as pl
from jax.experimental.pallas import tpu as pltpu

LN_EPS = 1e-5  # nn.LayerNorm default
_INV_SQRT2 = 1.0 / math.sqrt(2.0)

# Tile-size targets (shrunk automatically when a dim is small / not divisible).
_TM_TGT = 256   # row tiles (sublane axis, multiple of 8)
_TN_TGT = 256   # output-column tiles (lane axis, multiple of 128)
_TK_TGT = 512   # reduction tiles (lane axis, multiple of 128)


def _pick_tile(dim, target, align):
    """Largest `align`-aligned divisor of `dim` that is <= target, else full dim."""
    if dim <= target:
        return dim
    t = (target // align) * align
    while t >= align:
        if dim % t == 0:
            return t
        t -= align
    return dim


# ----------------------------- kernel helpers ------------------------------

def _ln_f32(x, gamma, beta):
    mean = jnp.mean(x, axis=-1, keepdims=True)
    var = jnp.mean(jnp.square(x - mean), axis=-1, keepdims=True)
    return (x - mean) * lax.rsqrt(var + LN_EPS) * gamma + beta


def _gelu_f32(x):
    # exact (erf) GELU, matching torch.nn.functional.gelu default
    return 0.5 * x * (1.0 + lax.erf(x * _INV_SQRT2))


# ------------------------------ Pallas kernels ------------------------------

def _ln_linear_kernel(x_ref, g_ref, b_ref, w_ref, o_ref):
    """LayerNorm prologue + bias-free linear (cross-attention Q projection)."""
    x = x_ref[...].astype(jnp.float32)                                # (tm, D)
    ln = _ln_f32(x, g_ref[...].astype(jnp.float32),
                 b_ref[...].astype(jnp.float32))
    o_ref[...] = jnp.dot(ln.astype(x_ref.dtype), w_ref[...],
                         preferred_element_type=jnp.float32).astype(o_ref.dtype)


def _ln_linear_qkv_kernel(x_ref, g_ref, b_ref, wq_ref, wk_ref, wv_ref,
                          q_ref, k_ref, v_ref):
    """Self-attention path: LN computed once, x read once, 3 projections."""
    x = x_ref[...].astype(jnp.float32)                                # (tm, D)
    ln = _ln_f32(x, g_ref[...].astype(jnp.float32),
                 b_ref[...].astype(jnp.float32)).astype(x_ref.dtype)
    q_ref[...] = jnp.dot(ln, wq_ref[...],
                         preferred_element_type=jnp.float32).astype(q_ref.dtype)
    k_ref[...] = jnp.dot(ln, wk_ref[...],
                         preferred_element_type=jnp.float32).astype(k_ref.dtype)
    v_ref[...] = jnp.dot(ln, wv_ref[...],
                         preferred_element_type=jnp.float32).astype(v_ref.dtype)


def _linear_kv_kernel(c_ref, wk_ref, wv_ref, k_ref, v_ref):
    """Cross-attention K/V: context read once, two bias-free projections."""
    c = c_ref[...]
    k_ref[...] = jnp.dot(c, wk_ref[...],
                         preferred_element_type=jnp.float32).astype(k_ref.dtype)
    v_ref[...] = jnp.dot(c, wv_ref[...],
                         preferred_element_type=jnp.float32).astype(v_ref.dtype)


def _ln_geglu_kernel(x_ref, g_ref, b_ref, wx_ref, wg_ref, bx_ref, bg_ref, o_ref):
    """LayerNorm prologue + GEGLU projection fully fused: x * gelu(gate)."""
    x = x_ref[...].astype(jnp.float32)                                # (tm, D)
    ln = _ln_f32(x, g_ref[...].astype(jnp.float32),
                 b_ref[...].astype(jnp.float32)).astype(x_ref.dtype)
    h_x = jnp.dot(ln, wx_ref[...],
                  preferred_element_type=jnp.float32) + bx_ref[...].astype(jnp.float32)
    h_g = jnp.dot(ln, wg_ref[...],
                  preferred_element_type=jnp.float32) + bg_ref[...].astype(jnp.float32)
    o_ref[...] = (h_x * _gelu_f32(h_g)).astype(o_ref.dtype)


def _matmul_kernel(x_ref, w_ref, o_ref, acc_ref):
    """K-tiled matmul, no bias."""
    @pl.when(pl.program_id(2) == 0)
    def _():
        acc_ref[...] = jnp.zeros_like(acc_ref)

    acc_ref[...] += jnp.dot(x_ref[...], w_ref[...],
                            preferred_element_type=jnp.float32)

    @pl.when(pl.program_id(2) == pl.num_programs(2) - 1)
    def _():
        o_ref[...] = acc_ref[...].astype(o_ref.dtype)


def _matmul_bias_res_kernel(x_ref, w_ref, b_ref, r_ref, o_ref, acc_ref):
    """K-tiled matmul with bias + residual-add fused into the epilogue."""
    @pl.when(pl.program_id(2) == 0)
    def _():
        acc_ref[...] = jnp.zeros_like(acc_ref)

    acc_ref[...] += jnp.dot(x_ref[...], w_ref[...],
                            preferred_element_type=jnp.float32)

    @pl.when(pl.program_id(2) == pl.num_programs(2) - 1)
    def _():
        o_ref[...] = (acc_ref[...]
                      + b_ref[...].astype(jnp.float32)
                      + r_ref[...].astype(jnp.float32)).astype(o_ref.dtype)


def _flash_attn_kernel(q_ref, k_ref, v_ref, o_ref, m_ref, l_ref, acc_ref, *, scale):
    """Flash attention with online softmax; one (batch*head, q-tile) per scratch."""
    ki = pl.program_id(2)

    @pl.when(ki == 0)
    def _():
        m_ref[...] = jnp.full(m_ref.shape, -jnp.inf, jnp.float32)
        l_ref[...] = jnp.zeros_like(l_ref)
        acc_ref[...] = jnp.zeros_like(acc_ref)

    q = q_ref[0]                                                       # (tq, Dh)
    k = k_ref[0]                                                       # (tkv, Dh)
    v = v_ref[0]                                                       # (tkv, Dh)

    # QK^T with contraction on the last dim (no transpose of K).
    s = lax.dot_general(q, k, (((1,), (1,)), ((), ())),
                        preferred_element_type=jnp.float32) * scale    # (tq, tkv)

    m_prev = m_ref[...]                                                # (tq, 1)
    m_new = jnp.maximum(m_prev, jnp.max(s, axis=-1, keepdims=True))
    alpha = jnp.exp(m_prev - m_new)
    p = jnp.exp(s - m_new)

    l_ref[...] = alpha * l_ref[...] + jnp.sum(p, axis=-1, keepdims=True)
    acc_ref[...] = alpha * acc_ref[...] + jnp.dot(
        p.astype(v.dtype), v, preferred_element_type=jnp.float32)
    m_ref[...] = m_new

    @pl.when(ki == pl.num_programs(2) - 1)
    def _():
        o_ref[0] = (acc_ref[...] *
                    pl.reciprocal(l_ref[...], approx=True)).astype(o_ref.dtype)


# ----------------------------- Pallas wrappers ------------------------------

def ln_linear(x2d, gamma, beta, w):
    T, D = x2d.shape
    Dout = w.shape[1]
    tm = _pick_tile(T, _TM_TGT, 8)
    tn = _pick_tile(Dout, _TN_TGT, 128)
    grid = (T // tm, Dout // tn)
    return pl.pallas_call(
        _ln_linear_kernel,
        out_shape=jax.ShapeDtypeStruct((T, Dout), x2d.dtype),
        grid=grid,
        in_specs=[
            pl.BlockSpec((tm, D), lambda i, j: (i, 0)),
            pl.BlockSpec((1, D), lambda i, j: (0, 0)),
            pl.BlockSpec((1, D), lambda i, j: (0, 0)),
            pl.BlockSpec((D, tn), lambda i, j: (0, j)),
        ],
        out_specs=pl.BlockSpec((tm, tn), lambda i, j: (i, j)),
        compiler_params=pltpu.CompilerParams(
            dimension_semantics=("parallel", "parallel")),
        cost_estimate=pl.CostEstimate(
            flops=2 * T * D * Dout, transcendentals=0,
            bytes_accessed=x2d.dtype.itemsize * (T * D + D * Dout + T * Dout)),
    )(x2d, gamma.reshape(1, D), beta.reshape(1, D), w)


def ln_linear_qkv(x2d, gamma, beta, wq, wk, wv):
    """Fused self-attention QKV projection with LN prologue (LN computed once)."""
    T, D = x2d.shape
    Dout = wq.shape[1]
    tm = _pick_tile(T, _TM_TGT, 8)
    tn = _pick_tile(Dout, _TN_TGT, 128)
    grid = (T // tm, Dout // tn)
    out_sds = jax.ShapeDtypeStruct((T, Dout), x2d.dtype)
    out_spec = pl.BlockSpec((tm, tn), lambda i, j: (i, j))
    w_spec = pl.BlockSpec((D, tn), lambda i, j: (0, j))
    return pl.pallas_call(
        _ln_linear_qkv_kernel,
        out_shape=(out_sds, out_sds, out_sds),
        grid=grid,
        in_specs=[
            pl.BlockSpec((tm, D), lambda i, j: (i, 0)),
            pl.BlockSpec((1, D), lambda i, j: (0, 0)),
            pl.BlockSpec((1, D), lambda i, j: (0, 0)),
            w_spec, w_spec, w_spec,
        ],
        out_specs=(out_spec, out_spec, out_spec),
        compiler_params=pltpu.CompilerParams(
            dimension_semantics=("parallel", "parallel")),
        cost_estimate=pl.CostEstimate(
            flops=6 * T * D * Dout, transcendentals=0,
            bytes_accessed=x2d.dtype.itemsize * (T * D + 3 * D * Dout + 3 * T * Dout)),
    )(x2d, gamma.reshape(1, D), beta.reshape(1, D), wq, wk, wv)


def linear_kv(c2d, wk, wv):
    """Fused cross-attention K/V projections (context read from HBM once)."""
    T, D = c2d.shape
    Dout = wk.shape[1]
    tm = _pick_tile(T, _TM_TGT, 8)
    tn = _pick_tile(Dout, _TN_TGT, 128)
    grid = (T // tm, Dout // tn)
    out_sds = jax.ShapeDtypeStruct((T, Dout), c2d.dtype)
    out_spec = pl.BlockSpec((tm, tn), lambda i, j: (i, j))
    w_spec = pl.BlockSpec((D, tn), lambda i, j: (0, j))
    return pl.pallas_call(
        _linear_kv_kernel,
        out_shape=(out_sds, out_sds),
        grid=grid,
        in_specs=[
            pl.BlockSpec((tm, D), lambda i, j: (i, 0)),
            w_spec, w_spec,
        ],
        out_specs=(out_spec, out_spec),
        compiler_params=pltpu.CompilerParams(
            dimension_semantics=("parallel", "parallel")),
        cost_estimate=pl.CostEstimate(
            flops=4 * T * D * Dout, transcendentals=0,
            bytes_accessed=c2d.dtype.itemsize * (T * D + 2 * D * Dout + 2 * T * Dout)),
    )(c2d, wk, wv)


def ln_geglu(x2d, gamma, beta, w1, b1):
    T, D = x2d.shape
    inner = w1.shape[1] // 2          # static: derived from the weight shape
    wx, wg = w1[:, :inner], w1[:, inner:]
    bx, bg = b1[:inner].reshape(1, inner), b1[inner:].reshape(1, inner)
    tm = _pick_tile(T, _TM_TGT, 8)
    tn = _pick_tile(inner, _TN_TGT, 128)
    grid = (T // tm, inner // tn)
    return pl.pallas_call(
        _ln_geglu_kernel,
        out_shape=jax.ShapeDtypeStruct((T, inner), x2d.dtype),
        grid=grid,
        in_specs=[
            pl.BlockSpec((tm, D), lambda i, j: (i, 0)),
            pl.BlockSpec((1, D), lambda i, j: (0, 0)),
            pl.BlockSpec((1, D), lambda i, j: (0, 0)),
            pl.BlockSpec((D, tn), lambda i, j: (0, j)),
            pl.BlockSpec((D, tn), lambda i, j: (0, j)),
            pl.BlockSpec((1, tn), lambda i, j: (0, j)),
            pl.BlockSpec((1, tn), lambda i, j: (0, j)),
        ],
        out_specs=pl.BlockSpec((tm, tn), lambda i, j: (i, j)),
        compiler_params=pltpu.CompilerParams(
            dimension_semantics=("parallel", "parallel")),
        cost_estimate=pl.CostEstimate(
            flops=4 * T * D * inner, transcendentals=T * inner,
            bytes_accessed=x2d.dtype.itemsize * (T * D + 2 * D * inner + T * inner)),
    )(x2d, gamma.reshape(1, D), beta.reshape(1, D), wx, wg, bx, bg)


def linear(x2d, w, b=None, residual=None):
    T, Din = x2d.shape
    Dout = w.shape[1]
    tm = _pick_tile(T, _TM_TGT, 8)
    tn = _pick_tile(Dout, _TN_TGT, 128)
    tk = _pick_tile(Din, _TK_TGT, 128)
    grid = (T // tm, Dout // tn, Din // tk)
    cost = pl.CostEstimate(
        flops=2 * T * Din * Dout, transcendentals=0,
        bytes_accessed=x2d.dtype.itemsize * (T * Din + Din * Dout + 2 * T * Dout))
    common = dict(
        out_shape=jax.ShapeDtypeStruct((T, Dout), x2d.dtype),
        grid=grid,
        out_specs=pl.BlockSpec((tm, tn), lambda i, j, k: (i, j)),
        scratch_shapes=[pltpu.VMEM((tm, tn), jnp.float32)],
        compiler_params=pltpu.CompilerParams(
            dimension_semantics=("parallel", "parallel", "arbitrary")),
        cost_estimate=cost,
    )
    if b is None and residual is None:
        return pl.pallas_call(
            _matmul_kernel,
            in_specs=[
                pl.BlockSpec((tm, tk), lambda i, j, k: (i, k)),
                pl.BlockSpec((tk, tn), lambda i, j, k: (k, j)),
            ],
            **common,
        )(x2d, w)
    if b is None:
        b = jnp.zeros((Dout,), x2d.dtype)
    if residual is None:
        residual = jnp.zeros((T, Dout), x2d.dtype)
    return pl.pallas_call(
        _matmul_bias_res_kernel,
        in_specs=[
            pl.BlockSpec((tm, tk), lambda i, j, k: (i, k)),
            pl.BlockSpec((tk, tn), lambda i, j, k: (k, j)),
            pl.BlockSpec((1, tn), lambda i, j, k: (0, j)),
            pl.BlockSpec((tm, tn), lambda i, j, k: (i, j)),
        ],
        **common,
    )(x2d, w, b.reshape(1, Dout), residual)


def flash_attention(q, k, v, scale):
    BH, N, Dh = q.shape
    M = k.shape[1]
    tq = _pick_tile(N, _TM_TGT, 8)
    tkv = _pick_tile(M, _TM_TGT, 8)
    grid = (BH, N // tq, M // tkv)
    kern = functools.partial(_flash_attn_kernel, scale=scale)
    return pl.pallas_call(
        kern,
        out_shape=jax.ShapeDtypeStruct((BH, N, Dh), q.dtype),
        grid=grid,
        in_specs=[
            pl.BlockSpec((1, tq, Dh), lambda b, qi, ki: (b, qi, 0)),
            pl.BlockSpec((1, tkv, Dh), lambda b, qi, ki: (b, ki, 0)),
            pl.BlockSpec((1, tkv, Dh), lambda b, qi, ki: (b, ki, 0)),
        ],
        out_specs=pl.BlockSpec((1, tq, Dh), lambda b, qi, ki: (b, qi, 0)),
        scratch_shapes=[
            pltpu.VMEM((tq, 1), jnp.float32),     # running max
            pltpu.VMEM((tq, 1), jnp.float32),     # running denom
            pltpu.VMEM((tq, Dh), jnp.float32),    # output accumulator
        ],
        compiler_params=pltpu.CompilerParams(
            dimension_semantics=("parallel", "parallel", "arbitrary")),
        cost_estimate=pl.CostEstimate(
            flops=4 * BH * N * M * Dh, transcendentals=BH * N * M,
            bytes_accessed=q.dtype.itemsize * BH * (2 * N * Dh + 2 * M * Dh)),
    )(q, k, v)


# --------------------------- module-level forward ---------------------------

def cross_attention_block(x, context, p, ln_g, ln_b, heads, dim_head):
    """x = to_out(attention(LN(x), context_or_LN(x))) + x, all fused paths."""
    B, N, D = x.shape
    inner = heads * dim_head
    scale = dim_head ** (-0.5)
    T = B * N
    x2d = x.reshape(T, D)

    if context is None:
        # self-attention: LN computed once, x read once, Q/K/V in one kernel.
        M = N
        q, k, v = ln_linear_qkv(x2d, ln_g, ln_b, p["wq"], p["wk"], p["wv"])
    else:
        # cross-attention: LN fused into the Q projection, K/V share a kernel.
        M = context.shape[1]
        c2d = context.reshape(B * M, context.shape[2])
        q = ln_linear(x2d, ln_g, ln_b, p["wq"])
        k, v = linear_kv(c2d, p["wk"], p["wv"])

    # TODO(synk): head split/merge remains XLA transpose glue (one extra HBM
    # pass of Q/K/V/O); a lane-dense per-batch head layout would remove it.
    def split_heads(t, L):
        return t.reshape(B, L, heads, dim_head).transpose(0, 2, 1, 3).reshape(
            B * heads, L, dim_head)

    qh = split_heads(q, N)
    kh = split_heads(k, M)
    vh = split_heads(v, M)

    o = flash_attention(qh, kh, vh, scale)                      # (B*H, N, Dh)
    o2d = o.reshape(B, heads, N, dim_head).transpose(0, 2, 1, 3).reshape(T, inner)

    # Output projection with bias + residual-add fused into the epilogue.
    y = linear(o2d, p["wo"], p["bo"], residual=x2d)
    return y.reshape(B, N, D)


def feed_forward_block(x, p, ln_g, ln_b):
    """x = Linear(GEGLU(LN(x))) + x, with LN+GEGLU fused and residual fused."""
    B, N, D = x.shape
    T = B * N
    x2d = x.reshape(T, D)
    g = ln_geglu(x2d, ln_g, ln_b, p["w1"], p["b1"])             # (T, ff_inner)
    y = linear(g, p["w2"], p["b2"], residual=x2d)
    return y.reshape(B, N, D)


def basic_transformer_block(x, context, params, heads, dim_head):
    # x = attn1(norm1(x)) + x   (self-attention)
    x = cross_attention_block(x, None, params["attn1"],
                              params["ln1_g"], params["ln1_b"], heads, dim_head)
    # x = attn2(norm2(x), context) + x   (cross-attention)
    x = cross_attention_block(x, context, params["attn2"],
                              params["ln2_g"], params["ln2_b"], heads, dim_head)
    # x = ff(norm3(x)) + x
    x = feed_forward_block(x, params["ff"], params["ln3_g"], params["ln3_b"])
    return x
    # TODO(synk): torch.utils.checkpoint wrapper is a no-op for forward math; omitted.


# --------------------------------- main -------------------------------------

def init_params(key, dim, heads, dim_head, context_dim, ff_mult=4):
    inner = heads * dim_head
    ff_inner = dim * ff_mult
    keys = jax.random.split(key, 16)

    def w(k, shape, scale=0.05):
        return (scale * jax.random.normal(k, shape)).astype(jnp.float32)

    params = {
        "ln1_g": jnp.ones((dim,), jnp.float32),
        "ln1_b": jnp.zeros((dim,), jnp.float32),
        "ln2_g": jnp.ones((dim,), jnp.float32),
        "ln2_b": jnp.zeros((dim,), jnp.float32),
        "ln3_g": jnp.ones((dim,), jnp.float32),
        "ln3_b": jnp.zeros((dim,), jnp.float32),
        "attn1": {  # self-attention (context_dim defaults to query_dim)
            "wq": w(keys[0], (dim, inner)),
            "wk": w(keys[1], (dim, inner)),
            "wv": w(keys[2], (dim, inner)),
            "wo": w(keys[3], (inner, dim)),
            "bo": w(keys[4], (dim,)),
        },
        "attn2": {  # cross-attention
            "wq": w(keys[5], (dim, inner)),
            "wk": w(keys[6], (context_dim, inner)),
            "wv": w(keys[7], (context_dim, inner)),
            "wo": w(keys[8], (inner, dim)),
            "bo": w(keys[9], (dim,)),
        },
        "ff": {  # GEGLU proj (dim -> 2*ff_inner), then Linear (ff_inner -> dim)
            "w1": w(keys[10], (dim, 2 * ff_inner)),
            "b1": w(keys[11], (2 * ff_inner,)),
            "w2": w(keys[12], (ff_inner, dim)),
            "b2": w(keys[13], (dim,)),
        },
        # NOTE: ff_inner is derived statically from w1.shape inside ln_geglu,
        # so no non-array entries live in this pytree.
    }
    return params


if __name__ == "__main__":
    # Small shapes consistent with the module: dim = n_heads * d_head here.
    B, N, DIM = 2, 8, 32
    HEADS, D_HEAD = 4, 8
    M_CTX, CTX_DIM = 8, 16

    key = jax.random.PRNGKey(0)
    k_x, k_ctx, k_p = jax.random.split(key, 3)

    x = jax.random.normal(k_x, (B, N, DIM), dtype=jnp.float32)
    context = jax.random.normal(k_ctx, (B, M_CTX, CTX_DIM), dtype=jnp.float32)
    params = init_params(k_p, DIM, HEADS, D_HEAD, CTX_DIM)

    fwd = jax.jit(functools.partial(basic_transformer_block,
                                    heads=HEADS, dim_head=D_HEAD))
    out = fwd(x, context, params)
    out = jax.block_until_ready(out)

    assert out.shape == (B, N, DIM), out.shape
    assert bool(jnp.all(jnp.isfinite(out)))
    print("KERNEL_OK")
</pallas_src>

<mosaic_0001>
module attributes {stable_mosaic.version = 11 : i64} {
  func.func @_flash_attn_kernel(%arg0: i32, %arg1: i32, %arg2: i32, %arg3: memref<1x8x8xf32, #tpu.memory_space<vmem>>, %arg4: memref<1x8x8xf32, #tpu.memory_space<vmem>>, %arg5: memref<1x8x8xf32, #tpu.memory_space<vmem>>, %arg6: memref<1x8x8xf32, #tpu.memory_space<vmem>>, %arg7: memref<8x1xf32, #tpu.memory_space<vmem>>, %arg8: memref<8x1xf32, #tpu.memory_space<vmem>>, %arg9: memref<8x8xf32, #tpu.memory_space<vmem>>) attributes {dimension_semantics = [#tpu.dimension_semantics<parallel>, #tpu.dimension_semantics<parallel>, #tpu.dimension_semantics<arbitrary>], iteration_bounds = array<i64: 8, 1, 1>, scalar_prefetch = 0 : i64, scratch_operands = 3 : i64, tpu.core_type = #tpu.core_type<tc>, window_params = [{transform_indices = @transform_0, window_bounds = array<i64: 1, 8, 8>}, {transform_indices = @transform_1, window_bounds = array<i64: 1, 8, 8>}, {transform_indices = @transform_2, window_bounds = array<i64: 1, 8, 8>}, {transform_indices = @transform_3, window_bounds = array<i64: 1, 8, 8>}]} {
    %c0_i32 = arith.constant 0 : i32
    %0 = arith.cmpi eq, %arg2, %c0_i32 : i32
    %1 = arith.extui %0 : i1 to i32
    %c0_i32_0 = arith.constant 0 : i32
    %2 = arith.cmpi ne, %1, %c0_i32_0 : i32
    scf.if %2 {
      %cst_27 = arith.constant 0xFF800000 : f32
      %37 = vector.broadcast %cst_27 : f32 to vector<8x1xf32>
      %c0_28 = arith.constant 0 : index
      %c0_29 = arith.constant 0 : index
      %38 = vector.load %arg7[%c0_28, %c0_29] : memref<8x1xf32, #tpu.memory_space<vmem>>, vector<8x1xf32>
      tpu.vector_store %arg7[%c0_28, %c0_29], %37 {strides = array<i32>} : memref<8x1xf32, #tpu.memory_space<vmem>>, vector<8x1xf32>,
      %cst_30 = arith.constant 0.000000e+00 : f32
      %39 = vector.broadcast %cst_30 : f32 to vector<8x1xf32>
      %c0_31 = arith.constant 0 : index
      %c0_32 = arith.constant 0 : index
      %40 = vector.load %arg8[%c0_31, %c0_32] : memref<8x1xf32, #tpu.memory_space<vmem>>, vector<8x1xf32>
      tpu.vector_store %arg8[%c0_31, %c0_32], %39 {strides = array<i32>} : memref<8x1xf32, #tpu.memory_space<vmem>>, vector<8x1xf32>,
      %cst_33 = arith.constant 0.000000e+00 : f32
      %41 = vector.broadcast %cst_33 : f32 to vector<8x8xf32>
      %c0_34 = arith.constant 0 : index
      %c0_35 = arith.constant 0 : index
      %42 = vector.load %arg9[%c0_34, %c0_35] : memref<8x8xf32, #tpu.memory_space<vmem>>, vector<8x8xf32>
      tpu.vector_store %arg9[%c0_34, %c0_35], %41 {strides = array<i32>} : memref<8x8xf32, #tpu.memory_space<vmem>>, vector<8x8xf32>,
    } else {
    }
    %c0 = arith.constant 0 : index
    %c0_1 = arith.constant 0 : index
    %c0_2 = arith.constant 0 : index
    %3 = vector.load %arg3[%c0, %c0_1, %c0_2] : memref<1x8x8xf32, #tpu.memory_space<vmem>>, vector<1x8x8xf32>
    %4 = vector.shape_cast %3 : vector<1x8x8xf32> to vector<8x8xf32>
    %c0_3 = arith.constant 0 : index
    %c0_4 = arith.constant 0 : index
    %c0_5 = arith.constant 0 : index
    %5 = vector.load %arg4[%c0_3, %c0_4, %c0_5] : memref<1x8x8xf32, #tpu.memory_space<vmem>>, vector<1x8x8xf32>
    %6 = vector.shape_cast %5 : vector<1x8x8xf32> to vector<8x8xf32>
    %c0_6 = arith.constant 0 : index
    %c0_7 = arith.constant 0 : index
    %c0_8 = arith.constant 0 : index
    %7 = vector.load %arg5[%c0_6, %c0_7, %c0_8] : memref<1x8x8xf32, #tpu.memory_space<vmem>>, vector<1x8x8xf32>
    %8 = vector.shape_cast %7 : vector<1x8x8xf32> to vector<8x8xf32>
    %cst = arith.constant dense<0.000000e+00> : vector<8x8xf32>
    %9 = tpu.matmul %4, %6, %cst {dimension_numbers = #tpu.dot_dimension_numbers<[1], [1], [0], [0], [0, 0, 1, 0], [], []>} : vector<8x8xf32>, vector<8x8xf32>, vector<8x8xf32> -> vector<8x8xf32>
    %cst_9 = arith.constant 0.353553385 : f32
    %10 = vector.broadcast %cst_9 : f32 to vector<8x8xf32>
    %11 = arith.mulf %9, %10 : vector<8x8xf32>
    %c0_10 = arith.constant 0 : index
    %c0_11 = arith.constant 0 : index
    %12 = vector.load %arg7[%c0_10, %c0_11] : memref<8x1xf32, #tpu.memory_space<vmem>>, vector<8x1xf32>
    %cst_12 = arith.constant dense<0xFF800000> : vector<8xf32>
    %13 = vector.multi_reduction <maximumf>, %11, %cst_12 [1] : vector<8x8xf32> to vector<8xf32>
    %14 = vector.shape_cast %13 : vector<8xf32> to vector<8x1xf32>
    %15 = arith.maximumf %12, %14 : vector<8x1xf32>
    %16 = arith.subf %12, %15 : vector<8x1xf32>
    %17 = math.exp %16 : vector<8x1xf32>
    %18 = vector.broadcast %15 : vector<8x1xf32> to vector<8x8xf32>
    %19 = arith.subf %11, %18 : vector<8x8xf32>
    %20 = math.exp %19 : vector<8x8xf32>
    %c0_13 = arith.constant 0 : index
    %c0_14 = arith.constant 0 : index
    %21 = vector.load %arg8[%c0_13, %c0_14] : memref<8x1xf32, #tpu.memory_space<vmem>>, vector<8x1xf32>
    %22 = arith.mulf %17, %21 : vector<8x1xf32>
    %cst_15 = arith.constant dense<0.000000e+00> : vector<8xf32>
    %23 = vector.multi_reduction <add>, %20, %cst_15 [1] : vector<8x8xf32> to vector<8xf32>
    %24 = vector.shape_cast %23 : vector<8xf32> to vector<8x1xf32>
    %25 = arith.addf %22, %24 : vector<8x1xf32>
    %c0_16 = arith.constant 0 : index
    %c0_17 = arith.constant 0 : index
    %26 = vector.load %arg8[%c0_16, %c0_17] : memref<8x1xf32, #tpu.memory_space<vmem>>, vector<8x1xf32>
    tpu.vector_store %arg8[%c0_16, %c0_17], %25 {strides = array<i32>} : memref<8x1xf32, #tpu.memory_space<vmem>>, vector<8x1xf32>,
    %c0_18 = arith.constant 0 : index
    %c0_19 = arith.constant 0 : index
    %27 = vector.load %arg9[%c0_18, %c0_19] : memref<8x8xf32, #tpu.memory_space<vmem>>, vector<8x8xf32>
    %28 = vector.broadcast %17 : vector<8x1xf32> to vector<8x8xf32>
    %29 = arith.mulf %28, %27 : vector<8x8xf32>
    %cst_20 = arith.constant dense<0.000000e+00> : vector<8x8xf32>
    %30 = tpu.matmul %20, %8, %cst_20 {dimension_numbers = #tpu.dot_dimension_numbers<[1], [0], [0], [1], [0, 0, 1, 1], [], []>} : vector<8x8xf32>, vector<8x8xf32>, vector<8x8xf32> -> vector<8x8xf32>
    %31 = arith.addf %29, %30 : vector<8x8xf32>
    %c0_21 = arith.constant 0 : index
    %c0_22 = arith.constant 0 : index
    %32 = vector.load %arg9[%c0_21, %c0_22] : memref<8x8xf32, #tpu.memory_space<vmem>>, vector<8x8xf32>
    tpu.vector_store %arg9[%c0_21, %c0_22], %31 {strides = array<i32>} : memref<8x8xf32, #tpu.memory_space<vmem>>, vector<8x8xf32>,
    %c0_23 = arith.constant 0 : index
    %c0_24 = arith.constant 0 : index
    %33 = vector.load %arg7[%c0_23, %c0_24] : memref<8x1xf32, #tpu.memory_space<vmem>>, vector<8x1xf32>
    tpu.vector_store %arg7[%c0_23, %c0_24], %15 {strides = array<i32>} : memref<8x1xf32, #tpu.memory_space<vmem>>, vector<8x1xf32>,
    %c0_i32_25 = arith.constant 0 : i32
    %34 = arith.cmpi eq, %arg2, %c0_i32_25 : i32
    %35 = arith.extui %34 : i1 to i32
    %c0_i32_26 = arith.constant 0 : i32
    %36 = arith.cmpi ne, %35, %c0_i32_26 : i32
    scf.if %36 {
      %c0_27 = arith.constant 0 : index
      %c0_28 = arith.constant 0 : index
      %37 = vector.load %arg9[%c0_27, %c0_28] : memref<8x8xf32, #tpu.memory_space<vmem>>, vector<8x8xf32>
      %c0_29 = arith.constant 0 : index
      %c0_30 = arith.constant 0 : index
      %38 = vector.load %arg8[%c0_29, %c0_30] : memref<8x1xf32, #tpu.memory_space<vmem>>, vector<8x1xf32>
      %39 = tpu.reciprocal %38 {approx = true} : vector<8x1xf32> -> vector<8x1xf32>
      %40 = vector.broadcast %39 : vector<8x1xf32> to vector<8x8xf32>
      %41 = arith.mulf %37, %40 : vector<8x8xf32>
      %c0_31 = arith.constant 0 : index
      %c0_32 = arith.constant 0 : index
      %c0_33 = arith.constant 0 : index
      %42 = vector.load %arg6[%c0_31, %c0_32, %c0_33] : memref<1x8x8xf32, #tpu.memory_space<vmem>>, vector<1x8x8xf32>
      %43 = vector.shape_cast %42 : vector<1x8x8xf32> to vector<8x8xf32>
      %44 = vector.shape_cast %41 : vector<8x8xf32> to vector<1x8x8xf32>
      tpu.vector_store %arg6[%c0_31, %c0_32, %c0_33], %44 {strides = array<i32>} : memref<1x8x8xf32, #tpu.memory_space<vmem>>, vector<1x8x8xf32>,
    } else {
    }
    return
  }
  func.func @transform_0(%arg0: i32, %arg1: i32, %arg2: i32) -> (i32, i32, i32) {
    %c0_i32 = arith.constant 0 : i32
    %c0_i32_0 = arith.constant 0 : i32
    return %arg0, %arg1, %c0_i32 : i32, i32, i32
  }
  func.func @transform_1(%arg0: i32, %arg1: i32, %arg2: i32) -> (i32, i32, i32) {
    %c0_i32 = arith.constant 0 : i32
    %c0_i32_0 = arith.constant 0 : i32
    return %arg0, %arg2, %c0_i32 : i32, i32, i32
  }
  func.func @transform_2(%arg0: i32, %arg1: i32, %arg2: i32) -> (i32, i32, i32) {
    %c0_i32 = arith.constant 0 : i32
    %c0_i32_0 = arith.constant 0 : i32
    return %arg0, %arg2, %c0_i32 : i32, i32, i32
  }
  func.func @transform_3(%arg0: i32, %arg1: i32, %arg2: i32) -> (i32, i32, i32) {
    %c0_i32 = arith.constant 0 : i32
    %c0_i32_0 = arith.constant 0 : i32
    return %arg0, %arg1, %c0_i32 : i32, i32, i32
  }
}

module attributes {stable_mosaic.version = 11 : i64} {
  func.func @_ln_linear_qkv_kernel(%arg0: i32, %arg1: i32, %arg2: memref<16x32xf32, #tpu.memory_space<vmem>>, %arg3: memref<1x32xf32, #tpu.memory_space<vmem>>, %arg4: memref<1x32xf32, #tpu.memory_space<vmem>>, %arg5: memref<32x32xf32, #tpu.memory_space<vmem>>, %arg6: memref<32x32xf32, #tpu.memory_space<vmem>>, %arg7: memref<32x32xf32, #tpu.memory_space<vmem>>, %arg8: memref<16x32xf32, #tpu.memory_space<vmem>>, %arg9: memref<16x32xf32, #tpu.memory_space<vmem>>, %arg10: memref<16x32xf32, #tpu.memory_space<vmem>>) attributes {dimension_semantics = [#tpu.dimension_semantics<parallel>, #tpu.dimension_semantics<parallel>], iteration_bounds = array<i64: 1, 1>, scalar_prefetch = 0 : i64, scratch_operands = 0 : i64, tpu.core_type = #tpu.core_type<tc>, window_params = [{transform_indices = @transform_0, window_bounds = array<i64: 16, 32>}, {pipeline_mode = #tpu.pipeline_mode<synchronous>, transform_indices = @transform_1, window_bounds = array<i64: 1, 32>}, {pipeline_mode = #tpu.pipeline_mode<synchronous>, transform_indices = @transform_2, window_bounds = array<i64: 1, 32>}, {transform_indices = @transform_3, window_bounds = array<i64: 32, 32>}, {transform_indices = @transform_4, window_bounds = array<i64: 32, 32>}, {transform_indices = @transform_5, window_bounds = array<i64: 32, 32>}, {transform_indices = @transform_6, window_bounds = array<i64: 16, 32>}, {transform_indices = @transform_7, window_bounds = array<i64: 16, 32>}, {transform_indices = @transform_8, window_bounds = array<i64: 16, 32>}]} {
    %c0 = arith.constant 0 : index
    %c0_0 = arith.constant 0 : index
    %0 = vector.load %arg2[%c0, %c0_0] : memref<16x32xf32, #tpu.memory_space<vmem>>, vector<16x32xf32>
    %c0_1 = arith.constant 0 : index
    %c0_2 = arith.constant 0 : index
    %1 = vector.load %arg3[%c0_1, %c0_2] : memref<1x32xf32, #tpu.memory_space<vmem>>, vector<1x32xf32>
    %c0_3 = arith.constant 0 : index
    %c0_4 = arith.constant 0 : index
    %2 = vector.load %arg4[%c0_3, %c0_4] : memref<1x32xf32, #tpu.memory_space<vmem>>, vector<1x32xf32>
    %cst = arith.constant dense<0.000000e+00> : vector<16xf32>
    %3 = vector.multi_reduction <add>, %0, %cst [1] : vector<16x32xf32> to vector<16xf32>
    %4 = vector.shape_cast %3 : vector<16xf32> to vector<16x1xf32>
    %cst_5 = arith.constant 3.200000e+01 : f32
    %5 = vector.broadcast %cst_5 : f32 to vector<16x1xf32>
    %6 = arith.divf %4, %5 : vector<16x1xf32>
    %7 = vector.broadcast %6 : vector<16x1xf32> to vector<16x32xf32>
    %8 = arith.subf %0, %7 : vector<16x32xf32>
    %9 = arith.mulf %8, %8 : vector<16x32xf32>
    %cst_6 = arith.constant dense<0.000000e+00> : vector<16xf32>
    %10 = vector.multi_reduction <add>, %9, %cst_6 [1] : vector<16x32xf32> to vector<16xf32>
    %11 = vector.shape_cast %10 : vector<16xf32> to vector<16x1xf32>
    %cst_7 = arith.constant 3.200000e+01 : f32
    %12 = vector.broadcast %cst_7 : f32 to vector<16x1xf32>
    %13 = arith.divf %11, %12 : vector<16x1xf32>
    %14 = vector.broadcast %6 : vector<16x1xf32> to vector<16x32xf32>
    %15 = arith.subf %0, %14 : vector<16x32xf32>
    %cst_8 = arith.constant 9.99999974E-6 : f32
    %16 = vector.broadcast %cst_8 : f32 to vector<16x1xf32>
    %17 = arith.addf %13, %16 : vector<16x1xf32>
    %18 = math.rsqrt %17 : vector<16x1xf32>
    %19 = vector.broadcast %18 : vector<16x1xf32> to vector<16x32xf32>
    %20 = arith.mulf %15, %19 : vector<16x32xf32>
    %21 = vector.broadcast %1 : vector<1x32xf32> to vector<16x32xf32>
    %22 = arith.mulf %20, %21 : vector<16x32xf32>
    %23 = vector.broadcast %2 : vector<1x32xf32> to vector<16x32xf32>
    %24 = arith.addf %22, %23 : vector<16x32xf32>
    %c0_9 = arith.constant 0 : index
    %c0_10 = arith.constant 0 : index
    %25 = vector.load %arg5[%c0_9, %c0_10] : memref<32x32xf32, #tpu.memory_space<vmem>>, vector<32x32xf32>
    %cst_11 = arith.constant dense<0.000000e+00> : vector<16x32xf32>
    %26 = tpu.matmul %24, %25, %cst_11 {dimension_numbers = #tpu.dot_dimension_numbers<[1], [0], [0], [1], [0, 0, 1, 1], [], []>} : vector<16x32xf32>, vector<32x32xf32>, vector<16x32xf32> -> vector<16x32xf32>
    %c0_12 = arith.constant 0 : index
    %c0_13 = arith.constant 0 : index
    %27 = vector.load %arg8[%c0_12, %c0_13] : memref<16x32xf32, #tpu.memory_space<vmem>>, vector<16x32xf32>
    tpu.vector_store %arg8[%c0_12, %c0_13], %26 {strides = array<i32>} : memref<16x32xf32, #tpu.memory_space<vmem>>, vector<16x32xf32>,
    %c0_14 = arith.constant 0 : index
    %c0_15 = arith.constant 0 : index
    %28 = vector.load %arg6[%c0_14, %c0_15] : memref<32x32xf32, #tpu.memory_space<vmem>>, vector<32x32xf32>
    %cst_16 = arith.constant dense<0.000000e+00> : vector<16x32xf32>
    %29 = tpu.matmul %24, %28, %cst_16 {dimension_numbers = #tpu.dot_dimension_numbers<[1], [0], [0], [1], [0, 0, 1, 1], [], []>} : vector<16x32xf32>, vector<32x32xf32>, vector<16x32xf32> -> vector<16x32xf32>
    %c0_17 = arith.constant 0 : index
    %c0_18 = arith.constant 0 : index
    %30 = vector.load %arg9[%c0_17, %c0_18] : memref<16x32xf32, #tpu.memory_space<vmem>>, vector<16x32xf32>
    tpu.vector_store %arg9[%c0_17, %c0_18], %29 {strides = array<i32>} : memref<16x32xf32, #tpu.memory_space<vmem>>, vector<16x32xf32>,
    %c0_19 = arith.constant 0 : index
    %c0_20 = arith.constant 0 : index
    %31 = vector.load %arg7[%c0_19, %c0_20] : memref<32x32xf32, #tpu.memory_space<vmem>>, vector<32x32xf32>
    %cst_21 = arith.constant dense<0.000000e+00> : vector<16x32xf32>
    %32 = tpu.matmul %24, %31, %cst_21 {dimension_numbers = #tpu.dot_dimension_numbers<[1], [0], [0], [1], [0, 0, 1, 1], [], []>} : vector<16x32xf32>, vector<32x32xf32>, vector<16x32xf32> -> vector<16x32xf32>
    %c0_22 = arith.constant 0 : index
    %c0_23 = arith.constant 0 : index
    %33 = vector.load %arg10[%c0_22, %c0_23] : memref<16x32xf32, #tpu.memory_space<vmem>>, vector<16x32xf32>
    tpu.vector_store %arg10[%c0_22, %c0_23], %32 {strides = array<i32>} : memref<16x32xf32, #tpu.memory_space<vmem>>, vector<16x32xf32>,
    return
  }
  func.func @transform_0(%arg0: i32, %arg1: i32) -> (i32, i32) {
    %c0_i32 = arith.constant 0 : i32
    %c0_i32_0 = arith.constant 0 : i32
    return %arg0, %c0_i32 : i32, i32
  }
  func.func @transform_1(%arg0: i32, %arg1: i32) -> (i32, i32) {
    %c0_i32 = arith.constant 0 : i32
    %c0_i32_0 = arith.constant 0 : i32
    %c0_i32_1 = arith.constant 0 : i32
    return %c0_i32, %c0_i32_0 : i32, i32
  }
  func.func @transform_2(%arg0: i32, %arg1: i32) -> (i32, i32) {
    %c0_i32 = arith.constant 0 : i32
    %c0_i32_0 = arith.constant 0 : i32
    %c0_i32_1 = arith.constant 0 : i32
    return %c0_i32, %c0_i32_0 : i32, i32
  }
  func.func @transform_3(%arg0: i32, %arg1: i32) -> (i32, i32) {
    %c0_i32 = arith.constant 0 : i32
    %c0_i32_0 = arith.constant 0 : i32
    return %c0_i32, %arg1 : i32, i32
  }
  func.func @transform_4(%arg0: i32, %arg1: i32) -> (i32, i32) {
    %c0_i32 = arith.constant 0 : i32
    %c0_i32_0 = arith.constant 0 : i32
    return %c0_i32, %arg1 : i32, i32
  }
  func.func @transform_5(%arg0: i32, %arg1: i32) -> (i32, i32) {
    %c0_i32 = arith.constant 0 : i32
    %c0_i32_0 = arith.constant 0 : i32
    return %c0_i32, %arg1 : i32, i32
  }
  func.func @transform_6(%arg0: i32, %arg1: i32) -> (i32, i32) {
    %c0_i32 = arith.constant 0 : i32
    return %arg0, %arg1 : i32, i32
  }
  func.func @transform_7(%arg0: i32, %arg1: i32) -> (i32, i32) {
    %c0_i32 = arith.constant 0 : i32
    return %arg0, %arg1 : i32, i32
  }
  func.func @transform_8(%arg0: i32, %arg1: i32) -> (i32, i32) {
    %c0_i32 = arith.constant 0 : i32
    return %arg0, %arg1 : i32, i32
  }
}

module attributes {stable_mosaic.version = 11 : i64} {
  func.func @_matmul_bias_res_kernel(%arg0: i32, %arg1: i32, %arg2: i32, %arg3: memref<16x32xf32, #tpu.memory_space<vmem>>, %arg4: memref<32x32xf32, #tpu.memory_space<vmem>>, %arg5: memref<1x32xf32, #tpu.memory_space<vmem>>, %arg6: memref<16x32xf32, #tpu.memory_space<vmem>>, %arg7: memref<16x32xf32, #tpu.memory_space<vmem>>, %arg8: memref<16x32xf32, #tpu.memory_space<vmem>>) attributes {dimension_semantics = [#tpu.dimension_semantics<parallel>, #tpu.dimension_semantics<parallel>, #tpu.dimension_semantics<arbitrary>], iteration_bounds = array<i64: 1, 1, 1>, scalar_prefetch = 0 : i64, scratch_operands = 1 : i64, tpu.core_type = #tpu.core_type<tc>, window_params = [{transform_indices = @transform_0, window_bounds = array<i64: 16, 32>}, {transform_indices = @transform_1, window_bounds = array<i64: 32, 32>}, {transform_indices = @transform_2, window_bounds = array<i64: 1, 32>}, {transform_indices = @transform_3, window_bounds = array<i64: 16, 32>}, {transform_indices = @transform_4, window_bounds = array<i64: 16, 32>}]} {
    %c0_i32 = arith.constant 0 : i32
    %0 = arith.cmpi eq, %arg2, %c0_i32 : i32
    %1 = arith.extui %0 : i1 to i32
    %c0_i32_0 = arith.constant 0 : i32
    %2 = arith.cmpi ne, %1, %c0_i32_0 : i32
    scf.if %2 {
      %cst_10 = arith.constant 0.000000e+00 : f32
      %12 = vector.broadcast %cst_10 : f32 to vector<16x32xf32>
      %c0_11 = arith.constant 0 : index
      %c0_12 = arith.constant 0 : index
      %13 = vector.load %arg8[%c0_11, %c0_12] : memref<16x32xf32, #tpu.memory_space<vmem>>, vector<16x32xf32>
      tpu.vector_store %arg8[%c0_11, %c0_12], %12 {strides = array<i32>} : memref<16x32xf32, #tpu.memory_space<vmem>>, vector<16x32xf32>,
    } else {
    }
    %c0 = arith.constant 0 : index
    %c0_1 = arith.constant 0 : index
    %3 = vector.load %arg8[%c0, %c0_1] : memref<16x32xf32, #tpu.memory_space<vmem>>, vector<16x32xf32>
    %c0_2 = arith.constant 0 : index
    %c0_3 = arith.constant 0 : index
    %4 = vector.load %arg3[%c0_2, %c0_3] : memref<16x32xf32, #tpu.memory_space<vmem>>, vector<16x32xf32>
    %c0_4 = arith.constant 0 : index
    %c0_5 = arith.constant 0 : index
    %5 = vector.load %arg4[%c0_4, %c0_5] : memref<32x32xf32, #tpu.memory_space<vmem>>, vector<32x32xf32>
    %cst = arith.constant dense<0.000000e+00> : vector<16x32xf32>
    %6 = tpu.matmul %4, %5, %cst {dimension_numbers = #tpu.dot_dimension_numbers<[1], [0], [0], [1], [0, 0, 1, 1], [], []>} : vector<16x32xf32>, vector<32x32xf32>, vector<16x32xf32> -> vector<16x32xf32>
    %7 = arith.addf %3, %6 : vector<16x32xf32>
    %c0_6 = arith.constant 0 : index
    %c0_7 = arith.constant 0 : index
    %8 = vector.load %arg8[%c0_6, %c0_7] : memref<16x32xf32, #tpu.memory_space<vmem>>, vector<16x32xf32>
    tpu.vector_store %arg8[%c0_6, %c0_7], %7 {strides = array<i32>} : memref<16x32xf32, #tpu.memory_space<vmem>>, vector<16x32xf32>,
    %c0_i32_8 = arith.constant 0 : i32
    %9 = arith.cmpi eq, %arg2, %c0_i32_8 : i32
    %10 = arith.extui %9 : i1 to i32
    %c0_i32_9 = arith.constant 0 : i32
    %11 = arith.cmpi ne, %10, %c0_i32_9 : i32
    scf.if %11 {
      %c0_10 = arith.constant 0 : index
      %c0_11 = arith.constant 0 : index
      %12 = vector.load %arg8[%c0_10, %c0_11] : memref<16x32xf32, #tpu.memory_space<vmem>>, vector<16x32xf32>
      %c0_12 = arith.constant 0 : index
      %c0_13 = arith.constant 0 : index
      %13 = vector.load %arg5[%c0_12, %c0_13] : memref<1x32xf32, #tpu.memory_space<vmem>>, vector<1x32xf32>
      %14 = vector.broadcast %13 : vector<1x32xf32> to vector<16x32xf32>
      %15 = arith.addf %12, %14 : vector<16x32xf32>
      %c0_14 = arith.constant 0 : index
      %c0_15 = arith.constant 0 : index
      %16 = vector.load %arg6[%c0_14, %c0_15] : memref<16x32xf32, #tpu.memory_space<vmem>>, vector<16x32xf32>
      %17 = arith.addf %15, %16 : vector<16x32xf32>
      %c0_16 = arith.constant 0 : index
      %c0_17 = arith.constant 0 : index
      %18 = vector.load %arg7[%c0_16, %c0_17] : memref<16x32xf32, #tpu.memory_space<vmem>>, vector<16x32xf32>
      tpu.vector_store %arg7[%c0_16, %c0_17], %17 {strides = array<i32>} : memref<16x32xf32, #tpu.memory_space<vmem>>, vector<16x32xf32>,
    } else {
    }
    return
  }
  func.func @transform_0(%arg0: i32, %arg1: i32, %arg2: i32) -> (i32, i32) {
    %c0_i32 = arith.constant 0 : i32
    return %arg0, %arg2 : i32, i32
  }
  func.func @transform_1(%arg0: i32, %arg1: i32, %arg2: i32) -> (i32, i32) {
    %c0_i32 = arith.constant 0 : i32
    return %arg2, %arg1 : i32, i32
  }
  func.func @transform_2(%arg0: i32, %arg1: i32, %arg2: i32) -> (i32, i32) {
    %c0_i32 = arith.constant 0 : i32
    %c0_i32_0 = arith.constant 0 : i32
    return %c0_i32, %arg1 : i32, i32
  }
  func.func @transform_3(%arg0: i32, %arg1: i32, %arg2: i32) -> (i32, i32) {
    %c0_i32 = arith.constant 0 : i32
    return %arg0, %arg1 : i32, i32
  }
  func.func @transform_4(%arg0: i32, %arg1: i32, %arg2: i32) -> (i32, i32) {
    %c0_i32 = arith.constant 0 : i32
    return %arg0, %arg1 : i32, i32
  }
}

module attributes {stable_mosaic.version = 11 : i64} {
  func.func @_ln_linear_kernel(%arg0: i32, %arg1: i32, %arg2: memref<16x32xf32, #tpu.memory_space<vmem>>, %arg3: memref<1x32xf32, #tpu.memory_space<vmem>>, %arg4: memref<1x32xf32, #tpu.memory_space<vmem>>, %arg5: memref<32x32xf32, #tpu.memory_space<vmem>>, %arg6: memref<16x32xf32, #tpu.memory_space<vmem>>) attributes {dimension_semantics = [#tpu.dimension_semantics<parallel>, #tpu.dimension_semantics<parallel>], iteration_bounds = array<i64: 1, 1>, scalar_prefetch = 0 : i64, scratch_operands = 0 : i64, tpu.core_type = #tpu.core_type<tc>, window_params = [{transform_indices = @transform_0, window_bounds = array<i64: 16, 32>}, {pipeline_mode = #tpu.pipeline_mode<synchronous>, transform_indices = @transform_1, window_bounds = array<i64: 1, 32>}, {pipeline_mode = #tpu.pipeline_mode<synchronous>, transform_indices = @transform_2, window_bounds = array<i64: 1, 32>}, {transform_indices = @transform_3, window_bounds = array<i64: 32, 32>}, {transform_indices = @transform_4, window_bounds = array<i64: 16, 32>}]} {
    %c0 = arith.constant 0 : index
    %c0_0 = arith.constant 0 : index
    %0 = vector.load %arg2[%c0, %c0_0] : memref<16x32xf32, #tpu.memory_space<vmem>>, vector<16x32xf32>
    %c0_1 = arith.constant 0 : index
    %c0_2 = arith.constant 0 : index
    %1 = vector.load %arg3[%c0_1, %c0_2] : memref<1x32xf32, #tpu.memory_space<vmem>>, vector<1x32xf32>
    %c0_3 = arith.constant 0 : index
    %c0_4 = arith.constant 0 : index
    %2 = vector.load %arg4[%c0_3, %c0_4] : memref<1x32xf32, #tpu.memory_space<vmem>>, vector<1x32xf32>
    %cst = arith.constant dense<0.000000e+00> : vector<16xf32>
    %3 = vector.multi_reduction <add>, %0, %cst [1] : vector<16x32xf32> to vector<16xf32>
    %4 = vector.shape_cast %3 : vector<16xf32> to vector<16x1xf32>
    %cst_5 = arith.constant 3.200000e+01 : f32
    %5 = vector.broadcast %cst_5 : f32 to vector<16x1xf32>
    %6 = arith.divf %4, %5 : vector<16x1xf32>
    %7 = vector.broadcast %6 : vector<16x1xf32> to vector<16x32xf32>
    %8 = arith.subf %0, %7 : vector<16x32xf32>
    %9 = arith.mulf %8, %8 : vector<16x32xf32>
    %cst_6 = arith.constant dense<0.000000e+00> : vector<16xf32>
    %10 = vector.multi_reduction <add>, %9, %cst_6 [1] : vector<16x32xf32> to vector<16xf32>
    %11 = vector.shape_cast %10 : vector<16xf32> to vector<16x1xf32>
    %cst_7 = arith.constant 3.200000e+01 : f32
    %12 = vector.broadcast %cst_7 : f32 to vector<16x1xf32>
    %13 = arith.divf %11, %12 : vector<16x1xf32>
    %14 = vector.broadcast %6 : vector<16x1xf32> to vector<16x32xf32>
    %15 = arith.subf %0, %14 : vector<16x32xf32>
    %cst_8 = arith.constant 9.99999974E-6 : f32
    %16 = vector.broadcast %cst_8 : f32 to vector<16x1xf32>
    %17 = arith.addf %13, %16 : vector<16x1xf32>
    %18 = math.rsqrt %17 : vector<16x1xf32>
    %19 = vector.broadcast %18 : vector<16x1xf32> to vector<16x32xf32>
    %20 = arith.mulf %15, %19 : vector<16x32xf32>
    %21 = vector.broadcast %1 : vector<1x32xf32> to vector<16x32xf32>
    %22 = arith.mulf %20, %21 : vector<16x32xf32>
    %23 = vector.broadcast %2 : vector<1x32xf32> to vector<16x32xf32>
    %24 = arith.addf %22, %23 : vector<16x32xf32>
    %c0_9 = arith.constant 0 : index
    %c0_10 = arith.constant 0 : index
    %25 = vector.load %arg5[%c0_9, %c0_10] : memref<32x32xf32, #tpu.memory_space<vmem>>, vector<32x32xf32>
    %cst_11 = arith.constant dense<0.000000e+00> : vector<16x32xf32>
    %26 = tpu.matmul %24, %25, %cst_11 {dimension_numbers = #tpu.dot_dimension_numbers<[1], [0], [0], [1], [0, 0, 1, 1], [], []>} : vector<16x32xf32>, vector<32x32xf32>, vector<16x32xf32> -> vector<16x32xf32>
    %c0_12 = arith.constant 0 : index
    %c0_13 = arith.constant 0 : index
    %27 = vector.load %arg6[%c0_12, %c0_13] : memref<16x32xf32, #tpu.memory_space<vmem>>, vector<16x32xf32>
    tpu.vector_store %arg6[%c0_12, %c0_13], %26 {strides = array<i32>} : memref<16x32xf32, #tpu.memory_space<vmem>>, vector<16x32xf32>,
    return
  }
  func.func @transform_0(%arg0: i32, %arg1: i32) -> (i32, i32) {
    %c0_i32 = arith.constant 0 : i32
    %c0_i32_0 = arith.constant 0 : i32
    return %arg0, %c0_i32 : i32, i32
  }
  func.func @transform_1(%arg0: i32, %arg1: i32) -> (i32, i32) {
    %c0_i32 = arith.constant 0 : i32
    %c0_i32_0 = arith.constant 0 : i32
    %c0_i32_1 = arith.constant 0 : i32
    return %c0_i32, %c0_i32_0 : i32, i32
  }
  func.func @transform_2(%arg0: i32, %arg1: i32) -> (i32, i32) {
    %c0_i32 = arith.constant 0 : i32
    %c0_i32_0 = arith.constant 0 : i32
    %c0_i32_1 = arith.constant 0 : i32
    return %c0_i32, %c0_i32_0 : i32, i32
  }
  func.func @transform_3(%arg0: i32, %arg1: i32) -> (i32, i32) {
    %c0_i32 = arith.constant 0 : i32
    %c0_i32_0 = arith.constant 0 : i32
    return %c0_i32, %arg1 : i32, i32
  }
  func.func @transform_4(%arg0: i32, %arg1: i32) -> (i32, i32) {
    %c0_i32 = arith.constant 0 : i32
    return %arg0, %arg1 : i32, i32
  }
}

module attributes {stable_mosaic.version = 11 : i64} {
  func.func @_linear_kv_kernel(%arg0: i32, %arg1: i32, %arg2: memref<16x16xf32, #tpu.memory_space<vmem>>, %arg3: memref<16x32xf32, #tpu.memory_space<vmem>>, %arg4: memref<16x32xf32, #tpu.memory_space<vmem>>, %arg5: memref<16x32xf32, #tpu.memory_space<vmem>>, %arg6: memref<16x32xf32, #tpu.memory_space<vmem>>) attributes {dimension_semantics = [#tpu.dimension_semantics<parallel>, #tpu.dimension_semantics<parallel>], iteration_bounds = array<i64: 1, 1>, scalar_prefetch = 0 : i64, scratch_operands = 0 : i64, tpu.core_type = #tpu.core_type<tc>, window_params = [{transform_indices = @transform_0, window_bounds = array<i64: 16, 16>}, {transform_indices = @transform_1, window_bounds = array<i64: 16, 32>}, {transform_indices = @transform_2, window_bounds = array<i64: 16, 32>}, {transform_indices = @transform_3, window_bounds = array<i64: 16, 32>}, {transform_indices = @transform_4, window_bounds = array<i64: 16, 32>}]} {
    %c0 = arith.constant 0 : index
    %c0_0 = arith.constant 0 : index
    %0 = vector.load %arg2[%c0, %c0_0] : memref<16x16xf32, #tpu.memory_space<vmem>>, vector<16x16xf32>
    %c0_1 = arith.constant 0 : index
    %c0_2 = arith.constant 0 : index
    %1 = vector.load %arg3[%c0_1, %c0_2] : memref<16x32xf32, #tpu.memory_space<vmem>>, vector<16x32xf32>
    %cst = arith.constant dense<0.000000e+00> : vector<16x32xf32>
    %2 = tpu.matmul %0, %1, %cst {dimension_numbers = #tpu.dot_dimension_numbers<[1], [0], [0], [1], [0, 0, 1, 1], [], []>} : vector<16x16xf32>, vector<16x32xf32>, vector<16x32xf32> -> vector<16x32xf32>
    %c0_3 = arith.constant 0 : index
    %c0_4 = arith.constant 0 : index
    %3 = vector.load %arg5[%c0_3, %c0_4] : memref<16x32xf32, #tpu.memory_space<vmem>>, vector<16x32xf32>
    tpu.vector_store %arg5[%c0_3, %c0_4], %2 {strides = array<i32>} : memref<16x32xf32, #tpu.memory_space<vmem>>, vector<16x32xf32>,
    %c0_5 = arith.constant 0 : index
    %c0_6 = arith.constant 0 : index
    %4 = vector.load %arg4[%c0_5, %c0_6] : memref<16x32xf32, #tpu.memory_space<vmem>>, vector<16x32xf32>
    %cst_7 = arith.constant dense<0.000000e+00> : vector<16x32xf32>
    %5 = tpu.matmul %0, %4, %cst_7 {dimension_numbers = #tpu.dot_dimension_numbers<[1], [0], [0], [1], [0, 0, 1, 1], [], []>} : vector<16x16xf32>, vector<16x32xf32>, vector<16x32xf32> -> vector<16x32xf32>
    %c0_8 = arith.constant 0 : index
    %c0_9 = arith.constant 0 : index
    %6 = vector.load %arg6[%c0_8, %c0_9] : memref<16x32xf32, #tpu.memory_space<vmem>>, vector<16x32xf32>
    tpu.vector_store %arg6[%c0_8, %c0_9], %5 {strides = array<i32>} : memref<16x32xf32, #tpu.memory_space<vmem>>, vector<16x32xf32>,
    return
  }
  func.func @transform_0(%arg0: i32, %arg1: i32) -> (i32, i32) {
    %c0_i32 = arith.constant 0 : i32
    %c0_i32_0 = arith.constant 0 : i32
    return %arg0, %c0_i32 : i32, i32
  }
  func.func @transform_1(%arg0: i32, %arg1: i32) -> (i32, i32) {
    %c0_i32 = arith.constant 0 : i32
    %c0_i32_0 = arith.constant 0 : i32
    return %c0_i32, %arg1 : i32, i32
  }
  func.func @transform_2(%arg0: i32, %arg1: i32) -> (i32, i32) {
    %c0_i32 = arith.constant 0 : i32
    %c0_i32_0 = arith.constant 0 : i32
    return %c0_i32, %arg1 : i32, i32
  }
  func.func @transform_3(%arg0: i32, %arg1: i32) -> (i32, i32) {
    %c0_i32 = arith.constant 0 : i32
    return %arg0, %arg1 : i32, i32
  }
  func.func @transform_4(%arg0: i32, %arg1: i32) -> (i32, i32) {
    %c0_i32 = arith.constant 0 : i32
    return %arg0, %arg1 : i32, i32
  }
}

module attributes {stable_mosaic.version = 11 : i64} {
  func.func @_ln_geglu_kernel(%arg0: i32, %arg1: i32, %arg2: memref<16x32xf32, #tpu.memory_space<vmem>>, %arg3: memref<1x32xf32, #tpu.memory_space<vmem>>, %arg4: memref<1x32xf32, #tpu.memory_space<vmem>>, %arg5: memref<32x128xf32, #tpu.memory_space<vmem>>, %arg6: memref<32x128xf32, #tpu.memory_space<vmem>>, %arg7: memref<1x128xf32, #tpu.memory_space<vmem>>, %arg8: memref<1x128xf32, #tpu.memory_space<vmem>>, %arg9: memref<16x128xf32, #tpu.memory_space<vmem>>) attributes {dimension_semantics = [#tpu.dimension_semantics<parallel>, #tpu.dimension_semantics<parallel>], iteration_bounds = array<i64: 1, 1>, scalar_prefetch = 0 : i64, scratch_operands = 0 : i64, tpu.core_type = #tpu.core_type<tc>, window_params = [{transform_indices = @transform_0, window_bounds = array<i64: 16, 32>}, {pipeline_mode = #tpu.pipeline_mode<synchronous>, transform_indices = @transform_1, window_bounds = array<i64: 1, 32>}, {pipeline_mode = #tpu.pipeline_mode<synchronous>, transform_indices = @transform_2, window_bounds = array<i64: 1, 32>}, {transform_indices = @transform_3, window_bounds = array<i64: 32, 128>}, {transform_indices = @transform_4, window_bounds = array<i64: 32, 128>}, {transform_indices = @transform_5, window_bounds = array<i64: 1, 128>}, {transform_indices = @transform_6, window_bounds = array<i64: 1, 128>}, {transform_indices = @transform_7, window_bounds = array<i64: 16, 128>}]} {
    %c0 = arith.constant 0 : index
    %c0_0 = arith.constant 0 : index
    %0 = vector.load %arg2[%c0, %c0_0] : memref<16x32xf32, #tpu.memory_space<vmem>>, vector<16x32xf32>
    %c0_1 = arith.constant 0 : index
    %c0_2 = arith.constant 0 : index
    %1 = vector.load %arg3[%c0_1, %c0_2] : memref<1x32xf32, #tpu.memory_space<vmem>>, vector<1x32xf32>
    %c0_3 = arith.constant 0 : index
    %c0_4 = arith.constant 0 : index
    %2 = vector.load %arg4[%c0_3, %c0_4] : memref<1x32xf32, #tpu.memory_space<vmem>>, vector<1x32xf32>
    %cst = arith.constant dense<0.000000e+00> : vector<16xf32>
    %3 = vector.multi_reduction <add>, %0, %cst [1] : vector<16x32xf32> to vector<16xf32>
    %4 = vector.shape_cast %3 : vector<16xf32> to vector<16x1xf32>
    %cst_5 = arith.constant 3.200000e+01 : f32
    %5 = vector.broadcast %cst_5 : f32 to vector<16x1xf32>
    %6 = arith.divf %4, %5 : vector<16x1xf32>
    %7 = vector.broadcast %6 : vector<16x1xf32> to vector<16x32xf32>
    %8 = arith.subf %0, %7 : vector<16x32xf32>
    %9 = arith.mulf %8, %8 : vector<16x32xf32>
    %cst_6 = arith.constant dense<0.000000e+00> : vector<16xf32>
    %10 = vector.multi_reduction <add>, %9, %cst_6 [1] : vector<16x32xf32> to vector<16xf32>
    %11 = vector.shape_cast %10 : vector<16xf32> to vector<16x1xf32>
    %cst_7 = arith.constant 3.200000e+01 : f32
    %12 = vector.broadcast %cst_7 : f32 to vector<16x1xf32>
    %13 = arith.divf %11, %12 : vector<16x1xf32>
    %14 = vector.broadcast %6 : vector<16x1xf32> to vector<16x32xf32>
    %15 = arith.subf %0, %14 : vector<16x32xf32>
    %cst_8 = arith.constant 9.99999974E-6 : f32
    %16 = vector.broadcast %cst_8 : f32 to vector<16x1xf32>
    %17 = arith.addf %13, %16 : vector<16x1xf32>
    %18 = math.rsqrt %17 : vector<16x1xf32>
    %19 = vector.broadcast %18 : vector<16x1xf32> to vector<16x32xf32>
    %20 = arith.mulf %15, %19 : vector<16x32xf32>
    %21 = vector.broadcast %1 : vector<1x32xf32> to vector<16x32xf32>
    %22 = arith.mulf %20, %21 : vector<16x32xf32>
    %23 = vector.broadcast %2 : vector<1x32xf32> to vector<16x32xf32>
    %24 = arith.addf %22, %23 : vector<16x32xf32>
    %c0_9 = arith.constant 0 : index
    %c0_10 = arith.constant 0 : index
    %25 = vector.load %arg5[%c0_9, %c0_10] : memref<32x128xf32, #tpu.memory_space<vmem>>, vector<32x128xf32>
    %cst_11 = arith.constant dense<0.000000e+00> : vector<16x128xf32>
    %26 = tpu.matmul %24, %25, %cst_11 {dimension_numbers = #tpu.dot_dimension_numbers<[1], [0], [0], [1], [0, 0, 1, 1], [], []>} : vector<16x32xf32>, vector<32x128xf32>, vector<16x128xf32> -> vector<16x128xf32>
    %c0_12 = arith.constant 0 : index
    %c0_13 = arith.constant 0 : index
    %27 = vector.load %arg7[%c0_12, %c0_13] : memref<1x128xf32, #tpu.memory_space<vmem>>, vector<1x128xf32>
    %28 = vector.broadcast %27 : vector<1x128xf32> to vector<16x128xf32>
    %29 = arith.addf %26, %28 : vector<16x128xf32>
    %c0_14 = arith.constant 0 : index
    %c0_15 = arith.constant 0 : index
    %30 = vector.load %arg6[%c0_14, %c0_15] : memref<32x128xf32, #tpu.memory_space<vmem>>, vector<32x128xf32>
    %cst_16 = arith.constant dense<0.000000e+00> : vector<16x128xf32>
    %31 = tpu.matmul %24, %30, %cst_16 {dimension_numbers = #tpu.dot_dimension_numbers<[1], [0], [0], [1], [0, 0, 1, 1], [], []>} : vector<16x32xf32>, vector<32x128xf32>, vector<16x128xf32> -> vector<16x128xf32>
    %c0_17 = arith.constant 0 : index
    %c0_18 = arith.constant 0 : index
    %32 = vector.load %arg8[%c0_17, %c0_18] : memref<1x128xf32, #tpu.memory_space<vmem>>, vector<1x128xf32>
    %33 = vector.broadcast %32 : vector<1x128xf32> to vector<16x128xf32>
    %34 = arith.addf %31, %33 : vector<16x128xf32>
    %cst_19 = arith.constant 5.000000e-01 : f32
    %35 = vector.broadcast %cst_19 : f32 to vector<16x128xf32>
    %36 = arith.mulf %35, %34 : vector<16x128xf32>
    %cst_20 = arith.constant 0.707106769 : f32
    %37 = vector.broadcast %cst_20 : f32 to vector<16x128xf32>
    %38 = arith.mulf %34, %37 : vector<16x128xf32>
    %39 = math.erf %38 : vector<16x128xf32>
    %cst_21 = arith.constant 1.000000e+00 : f32
    %40 = vector.broadcast %cst_21 : f32 to vector<16x128xf32>
    %41 = arith.addf %40, %39 : vector<16x128xf32>
    %42 = arith.mulf %36, %41 : vector<16x128xf32>
    %43 = arith.mulf %29, %42 : vector<16x128xf32>
    %c0_22 = arith.constant 0 : index
    %c0_23 = arith.constant 0 : index
    %44 = vector.load %arg9[%c0_22, %c0_23] : memref<16x128xf32, #tpu.memory_space<vmem>>, vector<16x128xf32>
    tpu.vector_store %arg9[%c0_22, %c0_23], %43 {strides = array<i32>} : memref<16x128xf32, #tpu.memory_space<vmem>>, vector<16x128xf32>,
    return
  }
  func.func @transform_0(%arg0: i32, %arg1: i32) -> (i32, i32) {
    %c0_i32 = arith.constant 0 : i32
    %c0_i32_0 = arith.constant 0 : i32
    return %arg0, %c0_i32 : i32, i32
  }
  func.func @transform_1(%arg0: i32, %arg1: i32) -> (i32, i32) {
    %c0_i32 = arith.constant 0 : i32
    %c0_i32_0 = arith.constant 0 : i32
    %c0_i32_1 = arith.constant 0 : i32
    return %c0_i32, %c0_i32_0 : i32, i32
  }
  func.func @transform_2(%arg0: i32, %arg1: i32) -> (i32, i32) {
    %c0_i32 = arith.constant 0 : i32
    %c0_i32_0 = arith.constant 0 : i32
    %c0_i32_1 = arith.constant 0 : i32
    return %c0_i32, %c0_i32_0 : i32, i32
  }
  func.func @transform_3(%arg0: i32, %arg1: i32) -> (i32, i32) {
    %c0_i32 = arith.constant 0 : i32
    %c0_i32_0 = arith.constant 0 : i32
    return %c0_i32, %arg1 : i32, i32
  }
  func.func @transform_4(%arg0: i32, %arg1: i32) -> (i32, i32) {
    %c0_i32 = arith.constant 0 : i32
    %c0_i32_0 = arith.constant 0 : i32
    return %c0_i32, %arg1 : i32, i32
  }
  func.func @transform_5(%arg0: i32, %arg1: i32) -> (i32, i32) {
    %c0_i32 = arith.constant 0 : i32
    %c0_i32_0 = arith.constant 0 : i32
    return %c0_i32, %arg1 : i32, i32
  }
  func.func @transform_6(%arg0: i32, %arg1: i32) -> (i32, i32) {
    %c0_i32 = arith.constant 0 : i32
    %c0_i32_0 = arith.constant 0 : i32
    return %c0_i32, %arg1 : i32, i32
  }
  func.func @transform_7(%arg0: i32, %arg1: i32) -> (i32, i32) {
    %c0_i32 = arith.constant 0 : i32
    return %arg0, %arg1 : i32, i32
  }
}

module attributes {stable_mosaic.version = 11 : i64} {
  func.func @_matmul_bias_res_kernel(%arg0: i32, %arg1: i32, %arg2: i32, %arg3: memref<16x128xf32, #tpu.memory_space<vmem>>, %arg4: memref<128x32xf32, #tpu.memory_space<vmem>>, %arg5: memref<1x32xf32, #tpu.memory_space<vmem>>, %arg6: memref<16x32xf32, #tpu.memory_space<vmem>>, %arg7: memref<16x32xf32, #tpu.memory_space<vmem>>, %arg8: memref<16x32xf32, #tpu.memory_space<vmem>>) attributes {dimension_semantics = [#tpu.dimension_semantics<parallel>, #tpu.dimension_semantics<parallel>, #tpu.dimension_semantics<arbitrary>], iteration_bounds = array<i64: 1, 1, 1>, scalar_prefetch = 0 : i64, scratch_operands = 1 : i64, tpu.core_type = #tpu.core_type<tc>, window_params = [{transform_indices = @transform_0, window_bounds = array<i64: 16, 128>}, {transform_indices = @transform_1, window_bounds = array<i64: 128, 32>}, {transform_indices = @transform_2, window_bounds = array<i64: 1, 32>}, {transform_indices = @transform_3, window_bounds = array<i64: 16, 32>}, {transform_indices = @transform_4, window_bounds = array<i64: 16, 32>}]} {
    %c0_i32 = arith.constant 0 : i32
    %0 = arith.cmpi eq, %arg2, %c0_i32 : i32
    %1 = arith.extui %0 : i1 to i32
    %c0_i32_0 = arith.constant 0 : i32
    %2 = arith.cmpi ne, %1, %c0_i32_0 : i32
    scf.if %2 {
      %cst_10 = arith.constant 0.000000e+00 : f32
      %12 = vector.broadcast %cst_10 : f32 to vector<16x32xf32>
      %c0_11 = arith.constant 0 : index
      %c0_12 = arith.constant 0 : index
      %13 = vector.load %arg8[%c0_11, %c0_12] : memref<16x32xf32, #tpu.memory_space<vmem>>, vector<16x32xf32>
      tpu.vector_store %arg8[%c0_11, %c0_12], %12 {strides = array<i32>} : memref<16x32xf32, #tpu.memory_space<vmem>>, vector<16x32xf32>,
    } else {
    }
    %c0 = arith.constant 0 : index
    %c0_1 = arith.constant 0 : index
    %3 = vector.load %arg8[%c0, %c0_1] : memref<16x32xf32, #tpu.memory_space<vmem>>, vector<16x32xf32>
    %c0_2 = arith.constant 0 : index
    %c0_3 = arith.constant 0 : index
    %4 = vector.load %arg3[%c0_2, %c0_3] : memref<16x128xf32, #tpu.memory_space<vmem>>, vector<16x128xf32>
    %c0_4 = arith.constant 0 : index
    %c0_5 = arith.constant 0 : index
    %5 = vector.load %arg4[%c0_4, %c0_5] : memref<128x32xf32, #tpu.memory_space<vmem>>, vector<128x32xf32>
    %cst = arith.constant dense<0.000000e+00> : vector<16x32xf32>
    %6 = tpu.matmul %4, %5, %cst {dimension_numbers = #tpu.dot_dimension_numbers<[1], [0], [0], [1], [0, 0, 1, 1], [], []>} : vector<16x128xf32>, vector<128x32xf32>, vector<16x32xf32> -> vector<16x32xf32>
    %7 = arith.addf %3, %6 : vector<16x32xf32>
    %c0_6 = arith.constant 0 : index
    %c0_7 = arith.constant 0 : index
    %8 = vector.load %arg8[%c0_6, %c0_7] : memref<16x32xf32, #tpu.memory_space<vmem>>, vector<16x32xf32>
    tpu.vector_store %arg8[%c0_6, %c0_7], %7 {strides = array<i32>} : memref<16x32xf32, #tpu.memory_space<vmem>>, vector<16x32xf32>,
    %c0_i32_8 = arith.constant 0 : i32
    %9 = arith.cmpi eq, %arg2, %c0_i32_8 : i32
    %10 = arith.extui %9 : i1 to i32
    %c0_i32_9 = arith.constant 0 : i32
    %11 = arith.cmpi ne, %10, %c0_i32_9 : i32
    scf.if %11 {
      %c0_10 = arith.constant 0 : index
      %c0_11 = arith.constant 0 : index
      %12 = vector.load %arg8[%c0_10, %c0_11] : memref<16x32xf32, #tpu.memory_space<vmem>>, vector<16x32xf32>
      %c0_12 = arith.constant 0 : index
      %c0_13 = arith.constant 0 : index
      %13 = vector.load %arg5[%c0_12, %c0_13] : memref<1x32xf32, #tpu.memory_space<vmem>>, vector<1x32xf32>
      %14 = vector.broadcast %13 : vector<1x32xf32> to vector<16x32xf32>
      %15 = arith.addf %12, %14 : vector<16x32xf32>
      %c0_14 = arith.constant 0 : index
      %c0_15 = arith.constant 0 : index
      %16 = vector.load %arg6[%c0_14, %c0_15] : memref<16x32xf32, #tpu.memory_space<vmem>>, vector<16x32xf32>
      %17 = arith.addf %15, %16 : vector<16x32xf32>
      %c0_16 = arith.constant 0 : index
      %c0_17 = arith.constant 0 : index
      %18 = vector.load %arg7[%c0_16, %c0_17] : memref<16x32xf32, #tpu.memory_space<vmem>>, vector<16x32xf32>
      tpu.vector_store %arg7[%c0_16, %c0_17], %17 {strides = array<i32>} : memref<16x32xf32, #tpu.memory_space<vmem>>, vector<16x32xf32>,
    } else {
    }
    return
  }
  func.func @transform_0(%arg0: i32, %arg1: i32, %arg2: i32) -> (i32, i32) {
    %c0_i32 = arith.constant 0 : i32
    return %arg0, %arg2 : i32, i32
  }
  func.func @transform_1(%arg0: i32, %arg1: i32, %arg2: i32) -> (i32, i32) {
    %c0_i32 = arith.constant 0 : i32
    return %arg2, %arg1 : i32, i32
  }
  func.func @transform_2(%arg0: i32, %arg1: i32, %arg2: i32) -> (i32, i32) {
    %c0_i32 = arith.constant 0 : i32
    %c0_i32_0 = arith.constant 0 : i32
    return %c0_i32, %arg1 : i32, i32
  }
  func.func @transform_3(%arg0: i32, %arg1: i32, %arg2: i32) -> (i32, i32) {
    %c0_i32 = arith.constant 0 : i32
    return %arg0, %arg1 : i32, i32
  }
  func.func @transform_4(%arg0: i32, %arg1: i32, %arg2: i32) -> (i32, i32) {
    %c0_i32 = arith.constant 0 : i32
    return %arg0, %arg1 : i32, i32
  }
}

</mosaic_0001>

<llo_original>
// kernel: basic_transformer_block.11
$region0: #{basic_transformer_block.11}
  #allocation0 [shape = 'u32[]', space=smem, size = 0x4, offset = 0x4, fixed_abs, tag = 'smem constant byte address 0x4 - core index']
  #allocation1 [shape = 'u32[144,128]{1,0:T(1,128)}', space=vmem, size = 0x12000, scoped, tag = 'internal scratch']
  #allocation2 [shape = 'f32[16,32]{1,0:T(8,128)}', space=vmem, size = 0x2000, scoped, tag = 'scratch operand']
  %s0 = inlined_call_operand.vmem [shape: f32[16,32], index: 0, kind: input, shape index: {}]
  %s1 = inlined_call_operand.vmem [shape: f32[32,32], index: 1, kind: input, shape index: {}]
  %s2 = inlined_call_operand.vmem [shape: f32[1,32], index: 2, kind: input, shape index: {}]
  %s3 = inlined_call_operand.vmem [shape: f32[16,32], index: 3, kind: input, shape index: {}]
  %s4 = inlined_call_operand.vmem [shape: f32[16,32], index: 4, kind: output, shape index: {}]
  %s5 = sld [smem:[#allocation0]]
  $region34: #{basic_transformer_block.11} parent=0
    _
  %s7 = ssub.s32 1, %s5
  %s8 = scalar_select 0, %s7, %s5
  // Predicated region
  $region2: #{basic_transformer_block.11} parent=0 // pred_check
    _
  $region3: #{basic_transformer_block.11} parent=0 // pred_check_branch
    %10 = sbr.rel (0) target = $region5
  $region4: #{basic_transformer_block.11} parent=0 // pred_region
    _
  $region5: #{basic_transformer_block.11} parent=0 // pred_fallthru
    _
  // Predicated region
  $region6: #{basic_transformer_block.11} parent=0 // pred_check
    _
  $region7: #{basic_transformer_block.11} parent=0 // pred_check_branch
    %12 = sbr.rel (0) target = $region9
  $region8: #{basic_transformer_block.11} parent=0 // pred_region
    _
  $region9: #{basic_transformer_block.11} parent=0 // pred_fallthru
    _
  // Predicated region
  $region10: #{basic_transformer_block.11} parent=0 // pred_check
    _
  $region11: #{basic_transformer_block.11} parent=0 // pred_check_branch
    %14 = sbr.rel (0) target = $region13
  $region12: #{basic_transformer_block.11} parent=0 // pred_region
    _
  $region13: #{basic_transformer_block.11} parent=0 // pred_fallthru
    _
  // Predicated region
  $region14: #{basic_transformer_block.11} parent=0 // pred_check
    _
  $region15: #{basic_transformer_block.11} parent=0 // pred_check_branch
    %16 = sbr.rel (0) target = $region17
  $region16: #{basic_transformer_block.11} parent=0 // pred_region
    _
  $region17: #{basic_transformer_block.11} parent=0 // pred_fallthru
    _
  %p17 = scmp.eq.s32.totalorder 0, 0
  // Predicated region
  $region18: #{basic_transformer_block.11} parent=0 // pred_check
    %p18 = pneg %p17
  $region19: #{basic_transformer_block.11} parent=0 // pred_check_branch
    %20 = sbr.rel (%p18) target = $region21
  $region20: #{basic_transformer_block.11} parent=0 // pred_region
    %vm21 = vcmask 261120
    %22 = vst.msk [vmem:[#allocation2] sm:$0xff] %vm21, 0.0
    %23 = vst.msk [vmem:[#allocation2 + $0x8] sm:$0xff] %vm21, 0.0
  $region21: #{basic_transformer_block.11} parent=0 // pred_fallthru
    _
  %v24 = vld [vmem:[#allocation2] sm:$0xff]
  %v25 = vld [vmem:[#allocation2 + $0x8] sm:$0xff]
  %v26 = vld [vmem:[%s0] sm:$0xff]
  %v27 = vld [vmem:[%s0 + $0x8] sm:$0xff]
  %v28 = vld [vmem:[%s1] sm:$0xff]
  %v29 = vld [vmem:[%s1 + $0x8] sm:$0xff]
  %v30 = vld [vmem:[%s1 + $0x10] sm:$0xff]
  %v31 = vld [vmem:[%s1 + $0x18] sm:$0xff]
  %vm32 = vcmask 261120
  %v34 = vsel %vm32, %v26, 0
  %v37 = vsel %vm32, %v27, 0
  %39 = vmatprep.subr.mxu0 0.0
  %40 = vmatpush1.msra.mxu0 %v28
  %41 = vmatprep.subr.mxu0 0.0
  %42 = vmatpush1.msra.mxu0 %v29
  %43 = vmatprep.subr.mxu0 0.0
  %44 = vmatpush1.msra.mxu0 %v30
  %45 = vmatprep.subr.mxu0 0.0
  %46 = vmatpush1.msra.mxu0 %v31
  %47 = vmatprep.subr.mxu0 0.0
  %48 = vmatpush1.msra.mxu0 0.0
  %49 = vmatprep.subr.mxu0 0.0
  %50 = vmatpush1.msra.mxu0 0.0
  %51 = vmatprep.subr.mxu0 0.0
  %52 = vmatpush1.msra.mxu0 0.0
  %53 = vmatprep.subr.mxu0 0.0
  %54 = vmatpush1.msra.mxu0 0.0
  %55 = vmatprep.subr.mxu0 0.0
  %56 = vmatpush1.msra.mxu0 0.0
  %57 = vmatprep.subr.mxu0 0.0
  %58 = vmatpush1.msra.mxu0 0.0
  %59 = vmatprep.subr.mxu0 0.0
  %60 = vmatpush1.msra.mxu0 0.0
  %61 = vmatprep.subr.mxu0 0.0
  %62 = vmatpush1.msra.mxu0 0.0
  %63 = vmatprep.subr.mxu0 0.0
  %64 = vmatpush1.msra.mxu0 0.0
  %65 = vmatprep.subr.mxu0 0.0
  %66 = vmatpush1.msra.mxu0 0.0
  %67 = vmatprep.subr.mxu0 0.0
  %68 = vmatpush1.msra.mxu0 0.0
  %69 = vmatprep.subr.mxu0 0.0
  %70 = vmatpush1.msra.mxu0 0.0
  %71 = vmatprep.subr.mxu0 0.0
  %72 = vmatpush1.msra.mxu0 0.0
  %73 = vmatprep.subr.mxu0 0.0
  %74 = vmatpush1.msra.mxu0 0.0
  %75 = vmatprep.subr.mxu0 0.0
  %76 = vmatpush1.msra.mxu0 0.0
  %77 = vmatprep.subr.mxu0 0.0
  %78 = vmatpush1.msra.mxu0 0.0
  %79 = vmatprep.subr.mxu0 0.0
  %80 = vmatpush1.msra.mxu0 0.0
  %81 = vmatprep.subr.mxu0 0.0
  %82 = vmatpush1.msra.mxu0 0.0
  %83 = vmatprep.subr.mxu0 0.0
  %84 = vmatpush1.msra.mxu0 0.0
  %85 = vmatprep.subr.mxu0 0.0
  %86 = vmatpush1.msra.mxu0 0.0
  %87 = vmatprep.subr.mxu0 0.0
  %88 = vmatpush1.msra.mxu0 0.0
  %89 = vmatprep.subr.mxu0 0.0
  %90 = vmatpush1.msra.mxu0 0.0
  %91 = vmatprep.subr.mxu0 0.0
  %92 = vmatpush1.msra.mxu0 0.0
  %93 = vmatprep.subr.mxu0 0.0
  %94 = vmatpush1.msra.mxu0 0.0
  %95 = vmatprep.subr.mxu0 0.0
  %96 = vmatpush1.msra.mxu0 0.0
  %97 = vmatprep.subr.mxu0 0.0
  %98 = vmatpush1.msra.mxu0 0.0
  %99 = vmatprep.subr.mxu0 0.0
  %100 = vmatpush1.msra.mxu0 0.0
  %101 = vmatprep.subr.mxu0 0.0
  %102 = vmatpush1.msra.mxu0 0.0
  %103 = vmatprep.mubr.f32.mxu0 0.0
  %104 = vmatmul.mubr.f32.gmra.mrb[0].mxu0 %v34
  %v105 = vpop.f32.mrb[0].mxu0
  %v106 = vadd.f32 0.0, %v105
  %v107 = vpop.f32.mrb[0].mxu0
  %108 = vmatprep.mubr.f32.mxu0 0.0
  %109 = vmatmul.mubr.f32.gmra.mrb[0].mxu0 %v37
  %v110 = vpop.f32.mrb[0].mxu0
  %v111 = vadd.f32 0.0, %v110
  %v112 = vpop.f32.mrb[0].mxu0
  %113 = vdwg.mxu0
  %v114 = vadd.f32 %v24, %v106
  %v115 = vadd.f32 %v25, %v111
  %116 = vst.msk [vmem:[#allocation2] sm:$0xff] %vm32, %v114
  %117 = vst.msk [vmem:[#allocation2 + $0x8] sm:$0xff] %vm32, %v115
  // Predicated region
  $region22: #{basic_transformer_block.11} parent=0 // pred_check
    %p118 = pneg %p17
  $region23: #{basic_transformer_block.11} parent=0 // pred_check_branch
    %120 = sbr.rel (%p118) target = $region25
  $region24: #{basic_transformer_block.11} parent=0 // pred_region
    %v121 = vld [vmem:[#allocation2] sm:$0xff]
    %v122 = vld [vmem:[#allocation2 + $0x8] sm:$0xff]
    %v123 = vld [vmem:[%s2] sm:$0x1]
    %v125 = vlaneseq
    %v126 = vshrl.u32 %v125, 7
    %v127 = vsub.s32 0, %v126
    %v128 = vrot.slane %v123, %v127
    %v130 = vadd.f32 %v121, %v128
    %v131 = vadd.f32 %v122, %v128
    %v132 = vld [vmem:[%s3] sm:$0xff]
    %v133 = vld [vmem:[%s3 + $0x8] sm:$0xff]
    %v134 = vadd.f32 %v130, %v132
    %v135 = vadd.f32 %v131, %v133
    %136 = vst.msk [vmem:[%s4] sm:$0xff] %vm32, %v134
    %137 = vst.msk [vmem:[%s4 + $0x8] sm:$0xff] %vm32, %v135
  $region25: #{basic_transformer_block.11} parent=0 // pred_fallthru
    _
  // Predicated region
  $region26: #{basic_transformer_block.11} parent=0 // pred_check
    _
  $region27: #{basic_transformer_block.11} parent=0 // pred_check_branch
    %139 = sbr.rel (0) target = $region29
  $region28: #{basic_transformer_block.11} parent=0 // pred_region
    _
  $region29: #{basic_transformer_block.11} parent=0 // pred_fallthru
    _
  // Predicated region
  $region30: #{basic_transformer_block.11} parent=0 // pred_check
    _
  $region31: #{basic_transformer_block.11} parent=0 // pred_check_branch
    %141 = sbr.rel (0) target = $region33
  $region32: #{basic_transformer_block.11} parent=0 // pred_region
    _
  $region33: #{basic_transformer_block.11} parent=0 // pred_fallthru
    _

// kernel: basic_transformer_block.12
$region0: #{basic_transformer_block.12}
  #allocation0 [shape = 'u32[]', space=smem, size = 0x4, offset = 0x4, fixed_abs, tag = 'smem constant byte address 0x4 - core index']
  #allocation1 [shape = 'u32[144,128]{1,0:T(1,128)}', space=vmem, size = 0x12000, scoped, tag = 'internal scratch']
  %s0 = inlined_call_operand.vmem [shape: f32[16,32], index: 0, kind: input, shape index: {}]
  %s1 = inlined_call_operand.vmem [shape: f32[1,32], index: 1, kind: input, shape index: {}]
  %s2 = inlined_call_operand.vmem [shape: f32[1,32], index: 2, kind: input, shape index: {}]
  %s3 = inlined_call_operand.vmem [shape: f32[32,32], index: 3, kind: input, shape index: {}]
  %s4 = inlined_call_operand.vmem [shape: f32[16,32], index: 4, kind: output, shape index: {}]
  %s5 = sld [smem:[#allocation0]]
  $region26: #{basic_transformer_block.12} parent=0
    _
  %s7 = ssub.s32 1, %s5
  %s8 = scalar_select 0, %s7, %s5
  // Predicated region
  $region2: #{basic_transformer_block.12} parent=0 // pred_check
    _
  $region3: #{basic_transformer_block.12} parent=0 // pred_check_branch
    %10 = sbr.rel (0) target = $region5
  $region4: #{basic_transformer_block.12} parent=0 // pred_region
    _
  $region5: #{basic_transformer_block.12} parent=0 // pred_fallthru
    _
  // Predicated region
  $region6: #{basic_transformer_block.12} parent=0 // pred_check
    _
  $region7: #{basic_transformer_block.12} parent=0 // pred_check_branch
    %12 = sbr.rel (0) target = $region9
  $region8: #{basic_transformer_block.12} parent=0 // pred_region
    _
  $region9: #{basic_transformer_block.12} parent=0 // pred_fallthru
    _
  // Predicated region
  $region10: #{basic_transformer_block.12} parent=0 // pred_check
    _
  $region11: #{basic_transformer_block.12} parent=0 // pred_check_branch
    %14 = sbr.rel (0) target = $region13
  $region12: #{basic_transformer_block.12} parent=0 // pred_region
    _
  $region13: #{basic_transformer_block.12} parent=0 // pred_fallthru
    _
  // Predicated region
  $region14: #{basic_transformer_block.12} parent=0 // pred_check
    _
  $region15: #{basic_transformer_block.12} parent=0 // pred_check_branch
    %16 = sbr.rel (0) target = $region17
  $region16: #{basic_transformer_block.12} parent=0 // pred_region
    _
  $region17: #{basic_transformer_block.12} parent=0 // pred_fallthru
    _
  %v17 = vld [vmem:[%s0] sm:$0xff]
  %v18 = vld [vmem:[%s0 + $0x8] sm:$0xff]
  %v19 = vld [vmem:[%s1] sm:$0x1]
  %v20 = vld [vmem:[%s2] sm:$0x1]
  %vm21 = vcmask 261120
  %v22 = vsel %vm21, %v17, 0.0
  %23 = vadd.xlane.f32.xlu0 %v22
  %v24 = vpop.xlane.xlu0 %23
  %v25 = vsel %vm21, %v18, 0.0
  %26 = vadd.xlane.f32.xlu0 %v25
  %v27 = vpop.xlane.xlu0 %26
  %v28 = vrcp.pop 32.0
  %v29 = vmul.f32 %v24, %v28
  %v30 = vmul.f32 %v27, %v28
  %v31 = vsub.f32 %v17, %v29
  %v32 = vsub.f32 %v18, %v30
  %v33 = vmul.f32 %v31, %v31
  %v34 = vmul.f32 %v32, %v32
  %v35 = vsel %vm21, %v33, 0.0
  %36 = vadd.xlane.f32.xlu0 %v35
  %v37 = vpop.xlane.xlu0 %36
  %v38 = vsel %vm21, %v34, 0.0
  %39 = vadd.xlane.f32.xlu0 %v38
  %v40 = vpop.xlane.xlu0 %39
  %v41 = vmul.f32 %v37, %v28
  %v42 = vmul.f32 %v40, %v28
  %v43 = vadd.f32 %v41, 1e-05
  %v44 = vadd.f32 %v42, 1e-05
  %v45 = vrsqrt.pop %v43
  %v46 = vrsqrt.pop %v44
  %v47 = vmul.f32 %v31, %v45
  %v48 = vmul.f32 %v32, %v46
  %v50 = vlaneseq
  %v51 = vshrl.u32 %v50, 7
  %v52 = vsub.s32 0, %v51
  %v53 = vrot.slane %v19, %v52
  %v55 = vmul.f32 %v47, %v53
  %v56 = vmul.f32 %v48, %v53
  %v58 = vlaneseq
  %v59 = vshrl.u32 %v58, 7
  %v60 = vsub.s32 0, %v59
  %v61 = vrot.slane %v20, %v60
  %v63 = vadd.f32 %v55, %v61
  %v64 = vadd.f32 %v56, %v61
  %v65 = vld [vmem:[%s3] sm:$0xff]
  %v66 = vld [vmem:[%s3 + $0x8] sm:$0xff]
  %v67 = vld [vmem:[%s3 + $0x10] sm:$0xff]
  %v68 = vld [vmem:[%s3 + $0x18] sm:$0xff]
  %v70 = vsel %vm21, %v63, 0
  %v73 = vsel %vm21, %v64, 0
  %75 = vmatprep.subr.mxu0 0.0
  %76 = vmatpush1.msra.mxu0 %v65
  %77 = vmatprep.subr.mxu0 0.0
  %78 = vmatpush1.msra.mxu0 %v66
  %79 = vmatprep.subr.mxu0 0.0
  %80 = vmatpush1.msra.mxu0 %v67
  %81 = vmatprep.subr.mxu0 0.0
  %82 = vmatpush1.msra.mxu0 %v68
  %83 = vmatprep.subr.mxu0 0.0
  %84 = vmatpush1.msra.mxu0 0.0
  %85 = vmatprep.subr.mxu0 0.0
  %86 = vmatpush1.msra.mxu0 0.0
  %87 = vmatprep.subr.mxu0 0.0
  %88 = vmatpush1.msra.mxu0 0.0
  %89 = vmatprep.subr.mxu0 0.0
  %90 = vmatpush1.msra.mxu0 0.0
  %91 = vmatprep.subr.mxu0 0.0
  %92 = vmatpush1.msra.mxu0 0.0
  %93 = vmatprep.subr.mxu0 0.0
  %94 = vmatpush1.msra.mxu0 0.0
  %95 = vmatprep.subr.mxu0 0.0
  %96 = vmatpush1.msra.mxu0 0.0
  %97 = vmatprep.subr.mxu0 0.0
  %98 = vmatpush1.msra.mxu0 0.0
  %99 = vmatprep.subr.mxu0 0.0
  %100 = vmatpush1.msra.mxu0 0.0
  %101 = vmatprep.subr.mxu0 0.0
  %102 = vmatpush1.msra.mxu0 0.0
  %103 = vmatprep.subr.mxu0 0.0
  %104 = vmatpush1.msra.mxu0 0.0
  %105 = vmatprep.subr.mxu0 0.0
  %106 = vmatpush1.msra.mxu0 0.0
  %107 = vmatprep.subr.mxu0 0.0
  %108 = vmatpush1.msra.mxu0 0.0
  %109 = vmatprep.subr.mxu0 0.0
  %110 = vmatpush1.msra.mxu0 0.0
  %111 = vmatprep.subr.mxu0 0.0
  %112 = vmatpush1.msra.mxu0 0.0
  %113 = vmatprep.subr.mxu0 0.0
  %114 = vmatpush1.msra.mxu0 0.0
  %115 = vmatprep.subr.mxu0 0.0
  %116 = vmatpush1.msra.mxu0 0.0
  %117 = vmatprep.subr.mxu0 0.0
  %118 = vmatpush1.msra.mxu0 0.0
  %119 = vmatprep.subr.mxu0 0.0
  %120 = vmatpush1.msra.mxu0 0.0
  %121 = vmatprep.subr.mxu0 0.0
  %122 = vmatpush1.msra.mxu0 0.0
  %123 = vmatprep.subr.mxu0 0.0
  %124 = vmatpush1.msra.mxu0 0.0
  %125 = vmatprep.subr.mxu0 0.0
  %126 = vmatpush1.msra.mxu0 0.0
  %127 = vmatprep.subr.mxu0 0.0
  %128 = vmatpush1.msra.mxu0 0.0
  %129 = vmatprep.subr.mxu0 0.0
  %130 = vmatpush1.msra.mxu0 0.0
  %131 = vmatprep.subr.mxu0 0.0
  %132 = vmatpush1.msra.mxu0 0.0
  %133 = vmatprep.subr.mxu0 0.0
  %134 = vmatpush1.msra.mxu0 0.0
  %135 = vmatprep.subr.mxu0 0.0
  %136 = vmatpush1.msra.mxu0 0.0
  %137 = vmatprep.subr.mxu0 0.0
  %138 = vmatpush1.msra.mxu0 0.0
  %139 = vmatprep.mubr.f32.mxu0 0.0
  %140 = vmatmul.mubr.f32.gmra.mrb[0].mxu0 %v70
  %v141 = vpop.f32.mrb[0].mxu0
  %v142 = vadd.f32 0.0, %v141
  %v143 = vpop.f32.mrb[0].mxu0
  %144 = vmatprep.mubr.f32.mxu0 0.0
  %145 = vmatmul.mubr.f32.gmra.mrb[0].mxu0 %v73
  %v146 = vpop.f32.mrb[0].mxu0
  %v147 = vadd.f32 0.0, %v146
  %v148 = vpop.f32.mrb[0].mxu0
  %149 = vdwg.mxu0
  %150 = vst.msk [vmem:[%s4] sm:$0xff] %vm21, %v142
  %151 = vst.msk [vmem:[%s4 + $0x8] sm:$0xff] %vm21, %v147
  // Predicated region
  $region18: #{basic_transformer_block.12} parent=0 // pred_check
    _
  $region19: #{basic_transformer_block.12} parent=0 // pred_check_branch
    %153 = sbr.rel (0) target = $region21
  $region20: #{basic_transformer_block.12} parent=0 // pred_region
    _
  $region21: #{basic_transformer_block.12} parent=0 // pred_fallthru
    _
  // Predicated region
  $region22: #{basic_transformer_block.12} parent=0 // pred_check
    _
  $region23: #{basic_transformer_block.12} parent=0 // pred_check_branch
    %155 = sbr.rel (0) target = $region25
  $region24: #{basic_transformer_block.12} parent=0 // pred_region
    _
  $region25: #{basic_transformer_block.12} parent=0 // pred_fallthru
    _

// kernel: basic_transformer_block.10
$region0: #{basic_transformer_block.10}
  #allocation0 [shape = 'u32[]', space=smem, size = 0x4, offset = 0x4, fixed_abs, tag = 'smem constant byte address 0x4 - core index']
  #allocation1 [shape = 'u32[144,128]{1,0:T(1,128)}', space=vmem, size = 0x12000, scoped, tag = 'internal scratch']
  #allocation2 [shape = 'f32[8,1]{1,0:T(8,128)}', space=vmem, size = 0x1000, scoped, tag = 'scratch operand']
  #allocation3 [shape = 'f32[8,1]{1,0:T(8,128)}', space=vmem, size = 0x1000, scoped, tag = 'scratch operand']
  #allocation4 [shape = 'f32[8,8]{1,0:T(8,128)}', space=vmem, size = 0x1000, scoped, tag = 'scratch operand']
  %s0 = inlined_call_operand.vmem [shape: f32[8,8,8], index: 0, kind: input, shape index: {}]
  %s1 = inlined_call_operand.vmem [shape: f32[8,8,8], index: 1, kind: input, shape index: {}]
  %s2 = inlined_call_operand.vmem [shape: f32[8,8,8], index: 2, kind: input, shape index: {}]
  %s3 = inlined_call_operand.vmem [shape: f32[8,8,8], index: 3, kind: output, shape index: {}]
  %s4 = sld [smem:[#allocation0]]
  $region53: #{basic_transformer_block.10} parent=0
    _
  %s6 = ssub.s32 1, %s4
  %s7 = scalar_select 0, %s6, %s4
  loop: start=0, step=1, limit=10
  $region2: #{basic_transformer_block.10} parent=0 // loop_pre_header
    _
  $region3: #{basic_transformer_block.10} parent=0 // loop_header
    %s9 = sphi 0, %s13
    %p10 = scmp.ge.s32.totalorder %s9, 10
    %s16 = sphi 0, %s35
    %s17 = sphi 0, %s31
    %s18 = sphi 0, %s27
    %s19 = sphi 0, %s16
    %s20 = sphi 0, %s17
    %s21 = sphi 0, %s18
    %s22 = sphi 0, %s19
    %s23 = sphi 0, %s20
    %s24 = sphi 0, %s21
    %s40 = sphi 0, %s42
    %s43 = sphi 0, %s40
    %s44 = sphi 0, %s43
    %s60 = sphi 0, %s44
    %s68 = sphi 0, %s70
    %s71 = sphi 0, %s68
    %s72 = sphi 0, %s71
    %s88 = sphi 0, %s72
    %s96 = sphi 0, %s98
    %s99 = sphi 0, %s96
    %s100 = sphi 0, %s99
    %s116 = sphi 0, %s100
    %s124 = sphi 0, %s126
    %s127 = sphi 0, %s124
    %s128 = sphi 0, %s127
    %s144 = sphi 0, %s128
  $region4: #{basic_transformer_block.10} parent=0 // loop_header_branch
    %12 = sbr.rel (%p10) target = $region8
  $region5: #{basic_transformer_block.10} parent=0 // loop_body
    %s14 = ssub.s32 %s9, 1
    %s15 = ssub.s32 %s9, 2
    %s25 = sadd.s32 1, %s18
    %p26 = scmp.ge.s32.totalorder %s25, 1
    %s27 = scalar_select %p26, 0, %s25
    %s28 = sadd.s32 1, %s17
    %s29 = scalar_select %p26, %s28, %s17
    %p30 = scmp.ge.s32.totalorder %s29, 1
    %s31 = scalar_select %p30, 0, %s29
    %s32 = sadd.s32 1, %s16
    %s33 = scalar_select %p30, %s32, %s16
    %p34 = scmp.ge.s32.totalorder %s33, 8
    %s35 = scalar_select %p34, 0, %s33
    %s36 = ssub.s32 %s16, %s35
    %s37 = ssub.s32 %s17, %s31
    %s38 = sor.u32 %s36, %s37
    %p39 = scmp.eq.s32.totalorder %s38, 0
    %s41 = sadd.s32 %s40, 1
    %s42 = scalar_select %p39, %s40, %s41
    %p45 = pneg %p39
    %p46 = scmp.eq.s32.totalorder %s9, 7
    %p47 = por %p45, %p46
    %p48 = scmp.ne.s32.totalorder %s40, %s43
    %p49 = scmp.eq.s32.totalorder %s9, 0
    %p50 = por %p48, %p49
    %p51 = scmp.ne.s32.totalorder %s40, %s43
    %p52 = scmp.eq.s32.totalorder %s14, 7
    %p53 = por %p51, %p52
    %p54 = scmp.ne.s32.totalorder %s43, %s44
    %p55 = scmp.eq.s32.totalorder %s14, 0
    %p56 = por %p54, %p55
    %p57 = scmp.ne.s32.totalorder %s43, %s44
    %p58 = scmp.eq.s32.totalorder %s15, 7
    %p59 = por %p57, %p58
    %p61 = scmp.ne.s32.totalorder %s44, %s60
    %p62 = scmp.eq.s32.totalorder %s15, 0
    %p63 = por %p61, %p62
    %s64 = ssub.s32 %s16, %s35
    %s65 = ssub.s32 %s18, %s27
    %s66 = sor.u32 %s64, %s65
    %p67 = scmp.eq.s32.totalorder %s66, 0
    %s69 = sadd.s32 %s68, 1
    %s70 = scalar_select %p67, %s68, %s69
    %p73 = pneg %p67
    %p74 = scmp.eq.s32.totalorder %s9, 7
    %p75 = por %p73, %p74
    %p76 = scmp.ne.s32.totalorder %s68, %s71
    %p77 = scmp.eq.s32.totalorder %s9, 0
    %p78 = por %p76, %p77
    %p79 = scmp.ne.s32.totalorder %s68, %s71
    %p80 = scmp.eq.s32.totalorder %s14, 7
    %p81 = por %p79, %p80
    %p82 = scmp.ne.s32.totalorder %s71, %s72
    %p83 = scmp.eq.s32.totalorder %s14, 0
    %p84 = por %p82, %p83
    %p85 = scmp.ne.s32.totalorder %s71, %s72
    %p86 = scmp.eq.s32.totalorder %s15, 7
    %p87 = por %p85, %p86
    %p89 = scmp.ne.s32.totalorder %s72, %s88
    %p90 = scmp.eq.s32.totalorder %s15, 0
    %p91 = por %p89, %p90
    %s92 = ssub.s32 %s16, %s35
    %s93 = ssub.s32 %s18, %s27
    %s94 = sor.u32 %s92, %s93
    %p95 = scmp.eq.s32.totalorder %s94, 0
    %s97 = sadd.s32 %s96, 1
    %s98 = scalar_select %p95, %s96, %s97
    %p101 = pneg %p95
    %p102 = scmp.eq.s32.totalorder %s9, 7
    %p103 = por %p101, %p102
    %p104 = scmp.ne.s32.totalorder %s96, %s99
    %p105 = scmp.eq.s32.totalorder %s9, 0
    %p106 = por %p104, %p105
    %p107 = scmp.ne.s32.totalorder %s96, %s99
    %p108 = scmp.eq.s32.totalorder %s14, 7
    %p109 = por %p107, %p108
    %p110 = scmp.ne.s32.totalorder %s99, %s100
    %p111 = scmp.eq.s32.totalorder %s14, 0
    %p112 = por %p110, %p111
    %p113 = scmp.ne.s32.totalorder %s99, %s100
    %p114 = scmp.eq.s32.totalorder %s15, 7
    %p115 = por %p113, %p114
    %p117 = scmp.ne.s32.totalorder %s100, %s116
    %p118 = scmp.eq.s32.totalorder %s15, 0
    %p119 = por %p117, %p118
    %s120 = ssub.s32 %s16, %s35
    %s121 = ssub.s32 %s17, %s31
    %s122 = sor.u32 %s120, %s121
    %p123 = scmp.eq.s32.totalorder %s122, 0
    %s125 = sadd.s32 %s124, 1
    %s126 = scalar_select %p123, %s124, %s125
    %p129 = pneg %p123
    %p130 = scmp.eq.s32.totalorder %s9, 7
    %p131 = por %p129, %p130
    %p132 = scmp.ne.s32.totalorder %s124, %s127
    %p133 = scmp.eq.s32.totalorder %s9, 0
    %p134 = por %p132, %p133
    %p135 = scmp.ne.s32.totalorder %s124, %s127
    %p136 = scmp.eq.s32.totalorder %s14, 7
    %p137 = por %p135, %p136
    %p138 = scmp.ne.s32.totalorder %s127, %s128
    %p139 = scmp.eq.s32.totalorder %s14, 0
    %p140 = por %p138, %p139
    %p141 = scmp.ne.s32.totalorder %s127, %s128
    %p142 = scmp.eq.s32.totalorder %s15, 7
    %p143 = por %p141, %p142
    %p145 = scmp.ne.s32.totalorder %s128, %s144
    %p146 = scmp.eq.s32.totalorder %s15, 0
    %p147 = por %p145, %p146
    %p148 = scmp.le.s32.totalorder 1, %s9
    %p149 = scmp.lt.s32.totalorder %s9, 9
    %p150 = pnand %p148, %p149
    %p151 = pneg %p150
    // Predicated region
    $region9: #{basic_transformer_block.10} parent=5 // pred_check
      _
    $region10: #{basic_transformer_block.10} parent=5 // pred_check_branch
      %153 = sbr.rel (%p150) target = $region12
    $region11: #{basic_transformer_block.10} parent=5 // pred_region
      %s154 = ssub.s32 %s9, 1
    $region12: #{basic_transformer_block.10} parent=5 // pred_fallthru
      _
    %p155 = scmp.lt.s32.totalorder %s9, 8
    // Predicated region
    $region13: #{basic_transformer_block.10} parent=5 // pred_check
      %p156 = pneg %p155
    $region14: #{basic_transformer_block.10} parent=5 // pred_check_branch
      %158 = sbr.rel (%p156) target = $region16
    $region15: #{basic_transformer_block.10} parent=5 // pred_region
      // Predicated region
      $region17: #{basic_transformer_block.10} parent=15 // pred_check
        %p159 = pneg %p50
      $region18: #{basic_transformer_block.10} parent=15 // pred_check_branch
        %161 = sbr.rel (%p159) target = $region20
      $region19: #{basic_transformer_block.10} parent=15 // pred_region
        %p162 = scmp.lt.s32.totalorder %s16, 7
        %s163 = scalar_select %p162, %s16, 7
        %p164 = scmp.lt.s32.totalorder %s17, 0
        %s165 = scalar_select %p164, %s17, 0
        %s166 = sadd.s32 %s165, %s163
        %s167 = smul.addr %s166, 8
        %s168 = scalar_lea.vmem %s0, %s167
      $region20: #{basic_transformer_block.10} parent=15 // pred_fallthru
        _
      // Predicated region
      $region21: #{basic_transformer_block.10} parent=15 // pred_check
        %p169 = pneg %p78
      $region22: #{basic_transformer_block.10} parent=15 // pred_check_branch
        %171 = sbr.rel (%p169) target = $region24
      $region23: #{basic_transformer_block.10} parent=15 // pred_region
        %p172 = scmp.lt.s32.totalorder %s16, 7
        %s173 = scalar_select %p172, %s16, 7
        %p174 = scmp.lt.s32.totalorder %s18, 0
        %s175 = scalar_select %p174, %s18, 0
        %s176 = sadd.s32 %s175, %s173
        %s177 = smul.addr %s176, 8
        %s178 = scalar_lea.vmem %s1, %s177
      $region24: #{basic_transformer_block.10} parent=15 // pred_fallthru
        _
      // Predicated region
      $region25: #{basic_transformer_block.10} parent=15 // pred_check
        %p179 = pneg %p106
      $region26: #{basic_transformer_block.10} parent=15 // pred_check_branch
        %181 = sbr.rel (%p179) target = $region28
      $region27: #{basic_transformer_block.10} parent=15 // pred_region
        %p182 = scmp.lt.s32.totalorder %s16, 7
        %s183 = scalar_select %p182, %s16, 7
        %p184 = scmp.lt.s32.totalorder %s18, 0
        %s185 = scalar_select %p184, %s18, 0
        %s186 = sadd.s32 %s185, %s183
        %s187 = smul.addr %s186, 8
        %s188 = scalar_lea.vmem %s2, %s187
      $region28: #{basic_transformer_block.10} parent=15 // pred_fallthru
        _
    $region16: #{basic_transformer_block.10} parent=5 // pred_fallthru
      _
    %p189 = scmp.le.s32.totalorder 1, %s9
    %p190 = scmp.lt.s32.totalorder %s9, 9
    %p191 = pnand %p189, %p190
    %p192 = pneg %p191
    // Predicated region
    $region29: #{basic_transformer_block.10} parent=5 // pred_check
      _
    $region30: #{basic_transformer_block.10} parent=5 // pred_check_branch
      %194 = sbr.rel (%p191) target = $region32
    $region31: #{basic_transformer_block.10} parent=5 // pred_region
      %s195 = ssub.s32 %s9, 1
      %p196 = scmp.lt.s32.totalorder %s19, 7
      %s197 = scalar_select %p196, %s19, 7
      %p198 = scmp.lt.s32.totalorder %s20, 0
      %s199 = scalar_select %p198, %s20, 0
      %s200 = sadd.s32 %s199, %s197
      %s201 = smul.addr %s200, 8
      %s202 = scalar_lea.vmem %s0, %s201
      %p203 = pneg %p56
      %p204 = pneg %p53
      %p205 = scmp.lt.s32.totalorder %s19, 7
      %s206 = scalar_select %p205, %s19, 7
      %p207 = scmp.lt.s32.totalorder %s21, 0
      %s208 = scalar_select %p207, %s21, 0
      %s209 = sadd.s32 %s208, %s206
      %s210 = smul.addr %s209, 8
      %s211 = scalar_lea.vmem %s1, %s210
      %p212 = pneg %p84
      %p213 = pneg %p81
      %p214 = scmp.lt.s32.totalorder %s19, 7
      %s215 = scalar_select %p214, %s19, 7
      %p216 = scmp.lt.s32.totalorder %s21, 0
      %s217 = scalar_select %p216, %s21, 0
      %s218 = sadd.s32 %s217, %s215
      %s219 = smul.addr %s218, 8
      %s220 = scalar_lea.vmem %s2, %s219
      %p221 = pneg %p112
      %p222 = pneg %p109
      %p223 = pneg %p140
      %p224 = pneg %p137
      %p225 = scmp.lt.s32.totalorder %s19, 7
      %s226 = scalar_select %p225, %s19, 7
      %p227 = scmp.lt.s32.totalorder %s20, 0
      %s228 = scalar_select %p227, %s20, 0
      %s229 = sadd.s32 %s228, %s226
      %s230 = smul.addr %s229, 8
      %s231 = scalar_lea.vmem %s3, %s230
      %p232 = scmp.lt.s32.totalorder %s19, 7
      %s233 = scalar_select %p232, %s19, 7
      %p234 = scmp.lt.s32.totalorder %s20, 0
      %s235 = scalar_select %p234, %s20, 0
      %s236 = sadd.s32 %s235, %s233
      %s237 = smul.addr %s236, 8
      %s238 = scalar_lea.vmem %s0, %s237
      %p239 = scmp.lt.s32.totalorder %s19, 7
      %s240 = scalar_select %p239, %s19, 7
      %p241 = scmp.lt.s32.totalorder %s21, 0
      %s242 = scalar_select %p241, %s21, 0
      %s243 = sadd.s32 %s242, %s240
      %s244 = smul.addr %s243, 8
      %s245 = scalar_lea.vmem %s1, %s244
      %p246 = scmp.lt.s32.totalorder %s19, 7
      %s247 = scalar_select %p246, %s19, 7
      %p248 = scmp.lt.s32.totalorder %s21, 0
      %s249 = scalar_select %p248, %s21, 0
      %s250 = sadd.s32 %s249, %s247
      %s251 = smul.addr %s250, 8
      %s252 = scalar_lea.vmem %s2, %s251
      %p253 = scmp.lt.s32.totalorder %s19, 7
      %s254 = scalar_select %p253, %s19, 7
      %p255 = scmp.lt.s32.totalorder %s20, 0
      %s256 = scalar_select %p255, %s20, 0
      %s257 = sadd.s32 %s256, %s254
      %s258 = smul.addr %s257, 8
      %s259 = scalar_lea.vmem %s3, %s258
      %p260 = scmp.eq.s32.totalorder %s21, 0
      // Predicated region
      $region33: #{basic_transformer_block.10} parent=31 // pred_check
        %p261 = pneg %p260
      $region34: #{basic_transformer_block.10} parent=31 // pred_check_branch
        %263 = sbr.rel (%p261) target = $region36
      $region35: #{basic_transformer_block.10} parent=31 // pred_region
        %vm264 = vcmask 7168
        %265 = vst.msk [vmem:[#allocation2] sm:$0xff] %vm264, -inf
        %266 = vst.msk [vmem:[#allocation3] sm:$0xff] %vm264, 0.0
        %vm267 = vcmask 64512
        %268 = vst.msk [vmem:[#allocation4] sm:$0xff] %vm267, 0.0
      $region36: #{basic_transformer_block.10} parent=31 // pred_fallthru
        _
      %v269 = vld [vmem:[%s238] sm:$0xff]
      %v270 = vld [vmem:[%s245] sm:$0xff]
      %v271 = vld [vmem:[%s252] sm:$0xff]
      %vm272 = vcmask 64512
      %v274 = vsel %vm272, %v269, 0
      %v277 = vsel %vm272, %v270, 0
      %279 = vmatprep.subr.mxu0 0.0
      %280 = vmatpush1.xpose.msra.mxu0 %v277
      %281 = vmatprep.subr.mxu0 0.0
      %282 = vmatpush1.xpose.msra.mxu0 0.0
      %283 = vmatprep.subr.mxu0 0.0
      %284 = vmatpush1.xpose.msra.mxu0 0.0
      %285 = vmatprep.subr.mxu0 0.0
      %286 = vmatpush1.xpose.msra.mxu0 0.0
      %287 = vmatprep.subr.mxu0 0.0
      %288 = vmatpush1.xpose.msra.mxu0 0.0
      %289 = vmatprep.subr.mxu0 0.0
      %290 = vmatpush1.xpose.msra.mxu0 0.0
      %291 = vmatprep.subr.mxu0 0.0
      %292 = vmatpush1.xpose.msra.mxu0 0.0
      %293 = vmatprep.subr.mxu0 0.0
      %294 = vmatpush1.xpose.msra.mxu0 0.0
      %295 = vmatprep.subr.mxu0 0.0
      %296 = vmatpush1.xpose.msra.mxu0 0.0
      %297 = vmatprep.subr.mxu0 0.0
      %298 = vmatpush1.xpose.msra.mxu0 0.0
      %299 = vmatprep.subr.mxu0 0.0
      %300 = vmatpush1.xpose.msra.mxu0 0.0
      %301 = vmatprep.subr.mxu0 0.0
      %302 = vmatpush1.xpose.msra.mxu0 0.0
      %303 = vmatprep.subr.mxu0 0.0
      %304 = vmatpush1.xpose.msra.mxu0 0.0
      %305 = vmatprep.subr.mxu0 0.0
      %306 = vmatpush1.xpose.msra.mxu0 0.0
      %307 = vmatprep.subr.mxu0 0.0
      %308 = vmatpush1.xpose.msra.mxu0 0.0
      %309 = vmatprep.subr.mxu0 0.0
      %310 = vmatpush1.xpose.msra.mxu0 0.0
      %311 = vmatprep.subr.mxu0 0.0
      %312 = vmatpush1.xpose.msra.mxu0 0.0
      %313 = vmatprep.subr.mxu0 0.0
      %314 = vmatpush1.xpose.msra.mxu0 0.0
      %315 = vmatprep.subr.mxu0 0.0
      %316 = vmatpush1.xpose.msra.mxu0 0.0
      %317 = vmatprep.subr.mxu0 0.0
      %318 = vmatpush1.xpose.msra.mxu0 0.0
      %319 = vmatprep.subr.mxu0 0.0
      %320 = vmatpush1.xpose.msra.mxu0 0.0
      %321 = vmatprep.subr.mxu0 0.0
      %322 = vmatpush1.xpose.msra.mxu0 0.0
      %323 = vmatprep.subr.mxu0 0.0
      %324 = vmatpush1.xpose.msra.mxu0 0.0
      %325 = vmatprep.subr.mxu0 0.0
      %326 = vmatpush1.xpose.msra.mxu0 0.0
      %327 = vmatprep.subr.mxu0 0.0
      %328 = vmatpush1.xpose.msra.mxu0 0.0
      %329 = vmatprep.subr.mxu0 0.0
      %330 = vmatpush1.xpose.msra.mxu0 0.0
      %331 = vmatprep.subr.mxu0 0.0
      %332 = vmatpush1.xpose.msra.mxu0 0.0
      %333 = vmatprep.subr.mxu0 0.0
      %334 = vmatpush1.xpose.msra.mxu0 0.0
      %335 = vmatprep.subr.mxu0 0.0
      %336 = vmatpush1.xpose.msra.mxu0 0.0
      %337 = vmatprep.subr.mxu0 0.0
      %338 = vmatpush1.xpose.msra.mxu0 0.0
      %339 = vmatprep.subr.mxu0 0.0
      %340 = vmatpush1.xpose.msra.mxu0 0.0
      %341 = vmatprep.subr.mxu0 0.0
      %342 = vmatpush1.xpose.msra.mxu0 0.0
      %343 = vmatprep.mubr.f32.mxu0 0.0
      %344 = vmatmul.mubr.f32.gmra.mrb[0].mxu0 %v274
      %v345 = vpop.f32.mrb[0].mxu0
      %v346 = vadd.f32 0.0, %v345
      %v347 = vpop.f32.mrb[0].mxu0
      %348 = vdwg.mxu0
      %v349 = vmul.f32 %v346, 0.35355338
      %v350 = vld [vmem:[#allocation2] sm:$0xff]
      %v351 = vsel %vm272, %v349, -inf
      %352 = vmax.xlane.f32.xlu0 %v351
      %v353 = vpop.xlane.xlu0 %352
      %v354 = vmax.f32 %v350, %v353
      %v355 = vsub.f32 %v350, %v354
      %v356 = vmul.f32 %v355, 1.442695
      %v357 = vpow.pop %v356
      %359 = vset.pattern.permute.xlu0 0
      %360 = vperm.xlu0 %359, %v354
      %v361 = vpop.permute.xlu0 %360
      %v363 = vsub.f32 %v349, %v361
      %v364 = vmul.f32 %v363, 1.442695
      %v365 = vpow.pop %v364
      %v366 = vld [vmem:[#allocation3] sm:$0xff]
      %v367 = vmul.f32 %v357, %v366
      %v368 = vsel %vm272, %v365, 0.0
      %369 = vadd.xlane.f32.xlu0 %v368
      %v370 = vpop.xlane.xlu0 %369
      %v371 = vadd.f32 %v367, %v370
      %vm372 = vcmask 7168
      %373 = vst.msk [vmem:[#allocation3] sm:$0xff] %vm372, %v371
      %v374 = vld [vmem:[#allocation4] sm:$0xff]
      %376 = vset.pattern.permute.xlu0 0
      %377 = vperm.xlu0 %376, %v357
      %v378 = vpop.permute.xlu0 %377
      %v380 = vmul.f32 %v378, %v374
      %v382 = vsel %vm272, %v365, 0
      %384 = vmatprep.subr.mxu0 0.0
      %385 = vmatpush1.msra.mxu0 %v271
      %386 = vmatprep.subr.mxu0 0.0
      %387 = vmatpush1.msra.mxu0 0.0
      %388 = vmatprep.subr.mxu0 0.0
      %389 = vmatpush1.msra.mxu0 0.0
      %390 = vmatprep.subr.mxu0 0.0
      %391 = vmatpush1.msra.mxu0 0.0
      %392 = vmatprep.subr.mxu0 0.0
      %393 = vmatpush1.msra.mxu0 0.0
      %394 = vmatprep.subr.mxu0 0.0
      %395 = vmatpush1.msra.mxu0 0.0
      %396 = vmatprep.subr.mxu0 0.0
      %397 = vmatpush1.msra.mxu0 0.0
      %398 = vmatprep.subr.mxu0 0.0
      %399 = vmatpush1.msra.mxu0 0.0
      %400 = vmatprep.subr.mxu0 0.0
      %401 = vmatpush1.msra.mxu0 0.0
      %402 = vmatprep.subr.mxu0 0.0
      %403 = vmatpush1.msra.mxu0 0.0
      %404 = vmatprep.subr.mxu0 0.0
      %405 = vmatpush1.msra.mxu0 0.0
      %406 = vmatprep.subr.mxu0 0.0
      %407 = vmatpush1.msra.mxu0 0.0
      %408 = vmatprep.subr.mxu0 0.0
      %409 = vmatpush1.msra.mxu0 0.0
      %410 = vmatprep.subr.mxu0 0.0
      %411 = vmatpush1.msra.mxu0 0.0
      %412 = vmatprep.subr.mxu0 0.0
      %413 = vmatpush1.msra.mxu0 0.0
      %414 = vmatprep.subr.mxu0 0.0
      %415 = vmatpush1.msra.mxu0 0.0
      %416 = vmatprep.subr.mxu0 0.0
      %417 = vmatpush1.msra.mxu0 0.0
      %418 = vmatprep.subr.mxu0 0.0
      %419 = vmatpush1.msra.mxu0 0.0
      %420 = vmatprep.subr.mxu0 0.0
      %421 = vmatpush1.msra.mxu0 0.0
      %422 = vmatprep.subr.mxu0 0.0
      %423 = vmatpush1.msra.mxu0 0.0
      %424 = vmatprep.subr.mxu0 0.0
      %425 = vmatpush1.msra.mxu0 0.0
      %426 = vmatprep.subr.mxu0 0.0
      %427 = vmatpush1.msra.mxu0 0.0
      %428 = vmatprep.subr.mxu0 0.0
      %429 = vmatpush1.msra.mxu0 0.0
      %430 = vmatprep.subr.mxu0 0.0
      %431 = vmatpush1.msra.mxu0 0.0
      %432 = vmatprep.subr.mxu0 0.0
      %433 = vmatpush1.msra.mxu0 0.0
      %434 = vmatprep.subr.mxu0 0.0
      %435 = vmatpush1.msra.mxu0 0.0
      %436 = vmatprep.subr.mxu0 0.0
      %437 = vmatpush1.msra.mxu0 0.0
      %438 = vmatprep.subr.mxu0 0.0
      %439 = vmatpush1.msra.mxu0 0.0
      %440 = vmatprep.subr.mxu0 0.0
      %441 = vmatpush1.msra.mxu0 0.0
      %442 = vmatprep.subr.mxu0 0.0
      %443 = vmatpush1.msra.mxu0 0.0
      %444 = vmatprep.subr.mxu0 0.0
      %445 = vmatpush1.msra.mxu0 0.0
      %446 = vmatprep.subr.mxu0 0.0
      %447 = vmatpush1.msra.mxu0 0.0
      %448 = vmatprep.mubr.f32.mxu0 0.0
      %449 = vmatmul.mubr.f32.gmra.mrb[0].mxu0 %v382
      %v450 = vpop.f32.mrb[0].mxu0
      %v451 = vadd.f32 0.0, %v450
      %v452 = vpop.f32.mrb[0].mxu0
      %453 = vdwg.mxu0
      %v454 = vadd.f32 %v380, %v451
      %455 = vst.msk [vmem:[#allocation4] sm:$0xff] %vm272, %v454
      %456 = vst.msk [vmem:[#allocation2] sm:$0xff] %vm372, %v354
      // Predicated region
      $region37: #{basic_transformer_block.10} parent=31 // pred_check
        %p457 = pneg %p260
      $region38: #{basic_transformer_block.10} parent=31 // pred_check_branch
        %459 = sbr.rel (%p457) target = $region40
      $region39: #{basic_transformer_block.10} parent=31 // pred_region
        %v460 = vld [vmem:[#allocation4] sm:$0xff]
        %v461 = vld [vmem:[#allocation3] sm:$0xff]
        %v462 = vrcp.pop %v461
        %464 = vset.pattern.permute.xlu0 0
        %465 = vperm.xlu0 %464, %v462
        %v466 = vpop.permute.xlu0 %465
        %v468 = vmul.f32 %v460, %v466
        %469 = vst.msk [vmem:[%s259] sm:$0xff] %vm272, %v468
      $region40: #{basic_transformer_block.10} parent=31 // pred_fallthru
        _
      %p470 = scmp.lt.s32.totalorder %s19, 7
      %s471 = scalar_select %p470, %s19, 7
      %p472 = scmp.lt.s32.totalorder %s20, 0
      %s473 = scalar_select %p472, %s20, 0
      %s474 = sadd.s32 %s473, %s471
      %s475 = smul.addr %s474, 8
      %s476 = scalar_lea.vmem %s3, %s475
      // Predicated region
      $region41: #{basic_transformer_block.10} parent=31 // pred_check
        %p477 = pneg %p137
      $region42: #{basic_transformer_block.10} parent=31 // pred_check_branch
        %479 = sbr.rel (%p477) target = $region44
      $region43: #{basic_transformer_block.10} parent=31 // pred_region
        _
      $region44: #{basic_transformer_block.10} parent=31 // pred_fallthru
        _
    $region32: #{basic_transformer_block.10} parent=5 // pred_fallthru
      _
    %p480 = scmp.le.s32.totalorder 2, %s9
    // Predicated region
    $region45: #{basic_transformer_block.10} parent=5 // pred_check
      %p481 = pneg %p480
    $region46: #{basic_transformer_block.10} parent=5 // pred_check_branch
      %483 = sbr.rel (%p481) target = $region48
    $region47: #{basic_transformer_block.10} parent=5 // pred_region
      %s484 = ssub.s32 %s9, 2
      // Predicated region
      $region49: #{basic_transformer_block.10} parent=47 // pred_check
        %p485 = pneg %p143
      $region50: #{basic_transformer_block.10} parent=47 // pred_check_branch
        %487 = sbr.rel (%p485) target = $region52
      $region51: #{basic_transformer_block.10} parent=47 // pred_region
        %p488 = scmp.lt.s32.totalorder %s22, 7
        %s489 = scalar_select %p488, %s22, 7
        %p490 = scmp.lt.s32.totalorder %s23, 0
        %s491 = scalar_select %p490, %s23, 0
        %s492 = sadd.s32 %s491, %s489
        %s493 = smul.addr %s492, 8
        %s494 = scalar_lea.vmem %s3, %s493
      $region52: #{basic_transformer_block.10} parent=47 // pred_fallthru
        _
    $region48: #{basic_transformer_block.10} parent=5 // pred_fallthru
      _
  $region6: #{basic_transformer_block.10} parent=0 // loop_footer
    %s13 = sadd.s32 1, %s9
  $region7: #{basic_transformer_block.10} parent=0 // loop_footer_branch
    %8 = sbr.rel target = $region3
  $region8: #{basic_transformer_block.10} parent=0 // loop_exit
    _

// kernel: basic_transformer_block.9
$region0: #{basic_transformer_block.9}
  #allocation0 [shape = 'u32[]', space=smem, size = 0x4, offset = 0x4, fixed_abs, tag = 'smem constant byte address 0x4 - core index']
  #allocation1 [shape = 'u32[144,128]{1,0:T(1,128)}', space=vmem, size = 0x12000, scoped, tag = 'internal scratch']
  %s0 = inlined_call_operand.vmem [shape: f32[16,32], index: 0, kind: input, shape index: {}]
  %s1 = inlined_call_operand.vmem [shape: f32[1,32], index: 1, kind: input, shape index: {}]
  %s2 = inlined_call_operand.vmem [shape: f32[1,32], index: 2, kind: input, shape index: {}]
  %s3 = inlined_call_operand.vmem [shape: f32[32,32], index: 3, kind: input, shape index: {}]
  %s4 = inlined_call_operand.hbm [shape: f32[32,32], index: 4, kind: input, shape index: {}]
  %s5 = inlined_call_operand.hbm [shape: f32[32,32], index: 5, kind: input, shape index: {}]
  %s6 = inlined_call_operand.vmem [shape: f32[16,32], index: 6, kind: output, shape index: {0}]
  %s7 = inlined_call_operand.vmem [shape: f32[16,32], index: 7, kind: output, shape index: {1}]
  %s8 = inlined_call_operand.vmem [shape: f32[16,32], index: 8, kind: output, shape index: {2}]
  %9 = xla_tuple %s6, %s7, %s8
  %s10 = sld [smem:[#allocation0]]
  $region58: #{basic_transformer_block.9} parent=0
    _
  %s12 = ssub.s32 1, %s10
  %s13 = scalar_select 0, %s12, %s10
  $region1: #{basic_transformer_block.9} parent=0
    #allocation2 [shape = 'u8[16384]{0}', space=vmem, size = 0x4000, scoped, tag = 'input window, operand 4, single buffered']
    #allocation3 [shape = 's32[1]{0}', space=sflag, size = 0x4, scoped, tag = 'scoped memory for basic_transformer_block.9']
    #allocation4 [shape = 'u8[16384]{0}', space=vmem, size = 0x4000, scoped, tag = 'input window, operand 5, single buffered']
    #allocation5 [shape = 's32[1]{0}', space=sflag, size = 0x4, scoped, tag = 'scoped memory for basic_transformer_block.9']
    %14 = vsyncpa [#allocation3], 0
    %15 = vsyncpa [#allocation5], 0
    // Predicated region
    $region2: #{basic_transformer_block.9} parent=1 // pred_check
      _
    $region3: #{basic_transformer_block.9} parent=1 // pred_check_branch
      %17 = sbr.rel (0) target = $region5
    $region4: #{basic_transformer_block.9} parent=1 // pred_region
      _
    $region5: #{basic_transformer_block.9} parent=1 // pred_fallthru
      _
    // Predicated region
    $region6: #{basic_transformer_block.9} parent=1 // pred_check
      _
    $region7: #{basic_transformer_block.9} parent=1 // pred_check_branch
      %19 = sbr.rel (0) target = $region9
    $region8: #{basic_transformer_block.9} parent=1 // pred_region
      _
    $region9: #{basic_transformer_block.9} parent=1 // pred_fallthru
      _
    // Predicated region
    $region10: #{basic_transformer_block.9} parent=1 // pred_check
      _
    $region11: #{basic_transformer_block.9} parent=1 // pred_check_branch
      %21 = sbr.rel (0) target = $region13
    $region12: #{basic_transformer_block.9} parent=1 // pred_region
      _
    $region13: #{basic_transformer_block.9} parent=1 // pred_fallthru
      _
    // Predicated region
    $region14: #{basic_transformer_block.9} parent=1 // pred_check
      _
    $region15: #{basic_transformer_block.9} parent=1 // pred_check_branch
      %23 = sbr.rel (0) target = $region17
    $region16: #{basic_transformer_block.9} parent=1 // pred_region
      _
    $region17: #{basic_transformer_block.9} parent=1 // pred_fallthru
      _
    // Predicated region
    $region18: #{basic_transformer_block.9} parent=1 // pred_check
      _
    $region19: #{basic_transformer_block.9} parent=1 // pred_check_branch
      %25 = sbr.rel (0) target = $region21
    $region20: #{basic_transformer_block.9} parent=1 // pred_region
      %s27 = ssub.s32 512, 512
      %28 = vsyncadd [#allocation3], %s27
      %s29 = sshll.u32 [#allocation2], 4
      %s30 = int_to_ptr.vmem [resolvable:$true] %s29
      %35 = dma.hbm_to_vmem [thread:$0]  %s4, 512, %s30, [#allocation3], 128, 128, 8
    $region21: #{basic_transformer_block.9} parent=1 // pred_fallthru
      _
    // Predicated region
    $region22: #{basic_transformer_block.9} parent=1 // pred_check
      _
    $region23: #{basic_transformer_block.9} parent=1 // pred_check_branch
      %37 = sbr.rel (0) target = $region25
    $region24: #{basic_transformer_block.9} parent=1 // pred_region
      %s39 = ssub.s32 512, 512
      %40 = vsyncadd [#allocation5], %s39
      %s41 = sshll.u32 [#allocation4], 4
      %s42 = int_to_ptr.vmem [resolvable:$true] %s41
      %47 = dma.hbm_to_vmem [thread:$0]  %s5, 512, %s42, [#allocation5], 128, 128, 8
    $region25: #{basic_transformer_block.9} parent=1 // pred_fallthru
      _
    // Predicated region
    $region26: #{basic_transformer_block.9} parent=1 // pred_check
      _
    $region27: #{basic_transformer_block.9} parent=1 // pred_check_branch
      %49 = sbr.rel (0) target = $region29
    $region28: #{basic_transformer_block.9} parent=1 // pred_region
      %50 = dma.done [#allocation3], 512
    $region29: #{basic_transformer_block.9} parent=1 // pred_fallthru
      _
    // Predicated region
    $region30: #{basic_transformer_block.9} parent=1 // pred_check
      _
    $region31: #{basic_transformer_block.9} parent=1 // pred_check_branch
      %52 = sbr.rel (0) target = $region33
    $region32: #{basic_transformer_block.9} parent=1 // pred_region
      %53 = dma.done [#allocation5], 512
    $region33: #{basic_transformer_block.9} parent=1 // pred_fallthru
      _
    %v54 = vld [vmem:[%s0] sm:$0xff]
    %v55 = vld [vmem:[%s0 + $0x8] sm:$0xff]
    %v56 = vld [vmem:[%s1] sm:$0x1]
    %v57 = vld [vmem:[%s2] sm:$0x1]
    %vm58 = vcmask 261120
    %v59 = vsel %vm58, %v54, 0.0
    %60 = vadd.xlane.f32.xlu0 %v59
    %v61 = vpop.xlane.xlu0 %60
    %v62 = vsel %vm58, %v55, 0.0
    %63 = vadd.xlane.f32.xlu0 %v62
    %v64 = vpop.xlane.xlu0 %63
    %v65 = vrcp.pop 32.0
    %v66 = vmul.f32 %v61, %v65
    %v67 = vmul.f32 %v64, %v65
    %v68 = vsub.f32 %v54, %v66
    %v69 = vsub.f32 %v55, %v67
    %v70 = vmul.f32 %v68, %v68
    %v71 = vmul.f32 %v69, %v69
    %v72 = vsel %vm58, %v70, 0.0
    %73 = vadd.xlane.f32.xlu0 %v72
    %v74 = vpop.xlane.xlu0 %73
    %v75 = vsel %vm58, %v71, 0.0
    %76 = vadd.xlane.f32.xlu0 %v75
    %v77 = vpop.xlane.xlu0 %76
    %v78 = vmul.f32 %v74, %v65
    %v79 = vmul.f32 %v77, %v65
    %v80 = vadd.f32 %v78, 1e-05
    %v81 = vadd.f32 %v79, 1e-05
    %v82 = vrsqrt.pop %v80
    %v83 = vrsqrt.pop %v81
    %v84 = vmul.f32 %v68, %v82
    %v85 = vmul.f32 %v69, %v83
    %v87 = vlaneseq
    %v88 = vshrl.u32 %v87, 7
    %v89 = vsub.s32 0, %v88
    %v90 = vrot.slane %v56, %v89
    %v92 = vmul.f32 %v84, %v90
    %v93 = vmul.f32 %v85, %v90
    %v95 = vlaneseq
    %v96 = vshrl.u32 %v95, 7
    %v97 = vsub.s32 0, %v96
    %v98 = vrot.slane %v57, %v97
    %v100 = vadd.f32 %v92, %v98
    %v101 = vadd.f32 %v93, %v98
    %v102 = vld [vmem:[%s3] sm:$0xff]
    %v103 = vld [vmem:[%s3 + $0x8] sm:$0xff]
    %v104 = vld [vmem:[%s3 + $0x10] sm:$0xff]
    %v105 = vld [vmem:[%s3 + $0x18] sm:$0xff]
    %v107 = vsel %vm58, %v100, 0
    %v110 = vsel %vm58, %v101, 0
    %112 = vmatprep.subr.mxu0 0.0
    %113 = vmatpush1.msra.mxu0 %v102
    %114 = vmatprep.subr.mxu0 0.0
    %115 = vmatpush1.msra.mxu0 %v103
    %116 = vmatprep.subr.mxu0 0.0
    %117 = vmatpush1.msra.mxu0 %v104
    %118 = vmatprep.subr.mxu0 0.0
    %119 = vmatpush1.msra.mxu0 %v105
    %120 = vmatprep.subr.mxu0 0.0
    %121 = vmatpush1.msra.mxu0 0.0
    %122 = vmatprep.subr.mxu0 0.0
    %123 = vmatpush1.msra.mxu0 0.0
    %124 = vmatprep.subr.mxu0 0.0
    %125 = vmatpush1.msra.mxu0 0.0
    %126 = vmatprep.subr.mxu0 0.0
    %127 = vmatpush1.msra.mxu0 0.0
    %128 = vmatprep.subr.mxu0 0.0
    %129 = vmatpush1.msra.mxu0 0.0
    %130 = vmatprep.subr.mxu0 0.0
    %131 = vmatpush1.msra.mxu0 0.0
    %132 = vmatprep.subr.mxu0 0.0
    %133 = vmatpush1.msra.mxu0 0.0
    %134 = vmatprep.subr.mxu0 0.0
    %135 = vmatpush1.msra.mxu0 0.0
    %136 = vmatprep.subr.mxu0 0.0
    %137 = vmatpush1.msra.mxu0 0.0
    %138 = vmatprep.subr.mxu0 0.0
    %139 = vmatpush1.msra.mxu0 0.0
    %140 = vmatprep.subr.mxu0 0.0
    %141 = vmatpush1.msra.mxu0 0.0
    %142 = vmatprep.subr.mxu0 0.0
    %143 = vmatpush1.msra.mxu0 0.0
    %144 = vmatprep.subr.mxu0 0.0
    %145 = vmatpush1.msra.mxu0 0.0
    %146 = vmatprep.subr.mxu0 0.0
    %147 = vmatpush1.msra.mxu0 0.0
    %148 = vmatprep.subr.mxu0 0.0
    %149 = vmatpush1.msra.mxu0 0.0
    %150 = vmatprep.subr.mxu0 0.0
    %151 = vmatpush1.msra.mxu0 0.0
    %152 = vmatprep.subr.mxu0 0.0
    %153 = vmatpush1.msra.mxu0 0.0
    %154 = vmatprep.subr.mxu0 0.0
    %155 = vmatpush1.msra.mxu0 0.0
    %156 = vmatprep.subr.mxu0 0.0
    %157 = vmatpush1.msra.mxu0 0.0
    %158 = vmatprep.subr.mxu0 0.0
    %159 = vmatpush1.msra.mxu0 0.0
    %160 = vmatprep.subr.mxu0 0.0
    %161 = vmatpush1.msra.mxu0 0.0
    %162 = vmatprep.subr.mxu0 0.0
    %163 = vmatpush1.msra.mxu0 0.0
    %164 = vmatprep.subr.mxu0 0.0
    %165 = vmatpush1.msra.mxu0 0.0
    %166 = vmatprep.subr.mxu0 0.0
    %167 = vmatpush1.msra.mxu0 0.0
    %168 = vmatprep.subr.mxu0 0.0
    %169 = vmatpush1.msra.mxu0 0.0
    %170 = vmatprep.subr.mxu0 0.0
    %171 = vmatpush1.msra.mxu0 0.0
    %172 = vmatprep.subr.mxu0 0.0
    %173 = vmatpush1.msra.mxu0 0.0
    %174 = vmatprep.subr.mxu0 0.0
    %175 = vmatpush1.msra.mxu0 0.0
    %176 = vmatprep.mubr.f32.mxu0 0.0
    %177 = vmatmul.mubr.f32.gmra.mrb[0].mxu0 %v107
    %v178 = vpop.f32.mrb[0].mxu0
    %v179 = vadd.f32 0.0, %v178
    %v180 = vpop.f32.mrb[0].mxu0
    %181 = vmatprep.mubr.f32.mxu0 0.0
    %182 = vmatmul.mubr.f32.gmra.mrb[0].mxu0 %v110
    %v183 = vpop.f32.mrb[0].mxu0
    %v184 = vadd.f32 0.0, %v183
    %v185 = vpop.f32.mrb[0].mxu0
    %186 = vdwg.mxu0
    %187 = vst.msk [vmem:[%s6] sm:$0xff] %vm58, %v179
    %188 = vst.msk [vmem:[%s6 + $0x8] sm:$0xff] %vm58, %v184
    %v189 = vld [vmem:[#allocation2] sm:$0xff]
    %v190 = vld [vmem:[#allocation2 + $0x8] sm:$0xff]
    %v191 = vld [vmem:[#allocation2 + $0x10] sm:$0xff]
    %v192 = vld [vmem:[#allocation2 + $0x18] sm:$0xff]
    %193 = vmatprep.subr.mxu0 0.0
    %194 = vmatpush1.msra.mxu0 %v189
    %195 = vmatprep.subr.mxu0 0.0
    %196 = vmatpush1.msra.mxu0 %v190
    %197 = vmatprep.subr.mxu0 0.0
    %198 = vmatpush1.msra.mxu0 %v191
    %199 = vmatprep.subr.mxu0 0.0
    %200 = vmatpush1.msra.mxu0 %v192
    %201 = vmatprep.subr.mxu0 0.0
    %202 = vmatpush1.msra.mxu0 0.0
    %203 = vmatprep.subr.mxu0 0.0
    %204 = vmatpush1.msra.mxu0 0.0
    %205 = vmatprep.subr.mxu0 0.0
    %206 = vmatpush1.msra.mxu0 0.0
    %207 = vmatprep.subr.mxu0 0.0
    %208 = vmatpush1.msra.mxu0 0.0
    %209 = vmatprep.subr.mxu0 0.0
    %210 = vmatpush1.msra.mxu0 0.0
    %211 = vmatprep.subr.mxu0 0.0
    %212 = vmatpush1.msra.mxu0 0.0
    %213 = vmatprep.subr.mxu0 0.0
    %214 = vmatpush1.msra.mxu0 0.0
    %215 = vmatprep.subr.mxu0 0.0
    %216 = vmatpush1.msra.mxu0 0.0
    %217 = vmatprep.subr.mxu0 0.0
    %218 = vmatpush1.msra.mxu0 0.0
    %219 = vmatprep.subr.mxu0 0.0
    %220 = vmatpush1.msra.mxu0 0.0
    %221 = vmatprep.subr.mxu0 0.0
    %222 = vmatpush1.msra.mxu0 0.0
    %223 = vmatprep.subr.mxu0 0.0
    %224 = vmatpush1.msra.mxu0 0.0
    %225 = vmatprep.subr.mxu0 0.0
    %226 = vmatpush1.msra.mxu0 0.0
    %227 = vmatprep.subr.mxu0 0.0
    %228 = vmatpush1.msra.mxu0 0.0
    %229 = vmatprep.subr.mxu0 0.0
    %230 = vmatpush1.msra.mxu0 0.0
    %231 = vmatprep.subr.mxu0 0.0
    %232 = vmatpush1.msra.mxu0 0.0
    %233 = vmatprep.subr.mxu0 0.0
    %234 = vmatpush1.msra.mxu0 0.0
    %235 = vmatprep.subr.mxu0 0.0
    %236 = vmatpush1.msra.mxu0 0.0
    %237 = vmatprep.subr.mxu0 0.0
    %238 = vmatpush1.msra.mxu0 0.0
    %239 = vmatprep.subr.mxu0 0.0
    %240 = vmatpush1.msra.mxu0 0.0
    %241 = vmatprep.subr.mxu0 0.0
    %242 = vmatpush1.msra.mxu0 0.0
    %243 = vmatprep.subr.mxu0 0.0
    %244 = vmatpush1.msra.mxu0 0.0
    %245 = vmatprep.subr.mxu0 0.0
    %246 = vmatpush1.msra.mxu0 0.0
    %247 = vmatprep.subr.mxu0 0.0
    %248 = vmatpush1.msra.mxu0 0.0
    %249 = vmatprep.subr.mxu0 0.0
    %250 = vmatpush1.msra.mxu0 0.0
    %251 = vmatprep.subr.mxu0 0.0
    %252 = vmatpush1.msra.mxu0 0.0
    %253 = vmatprep.subr.mxu0 0.0
    %254 = vmatpush1.msra.mxu0 0.0
    %255 = vmatprep.subr.mxu0 0.0
    %256 = vmatpush1.msra.mxu0 0.0
    %257 = vmatprep.mubr.f32.mxu0 0.0
    %258 = vmatmul.mubr.f32.gmra.mrb[0].mxu0 %v107
    %v259 = vpop.f32.mrb[0].mxu0
    %v260 = vadd.f32 0.0, %v259
    %v261 = vpop.f32.mrb[0].mxu0
    %262 = vmatprep.mubr.f32.mxu0 0.0
    %263 = vmatmul.mubr.f32.gmra.mrb[0].mxu0 %v110
    %v264 = vpop.f32.mrb[0].mxu0
    %v265 = vadd.f32 0.0, %v264
    %v266 = vpop.f32.mrb[0].mxu0
    %267 = vdwg.mxu0
    %268 = vst.msk [vmem:[%s7] sm:$0xff] %vm58, %v260
    %269 = vst.msk [vmem:[%s7 + $0x8] sm:$0xff] %vm58, %v265
    %v270 = vld [vmem:[#allocation4] sm:$0xff]
    %v271 = vld [vmem:[#allocation4 + $0x8] sm:$0xff]
    %v272 = vld [vmem:[#allocation4 + $0x10] sm:$0xff]
    %v273 = vld [vmem:[#allocation4 + $0x18] sm:$0xff]
    %274 = vmatprep.subr.mxu0 0.0
    %275 = vmatpush1.msra.mxu0 %v270
    %276 = vmatprep.subr.mxu0 0.0
    %277 = vmatpush1.msra.mxu0 %v271
    %278 = vmatprep.subr.mxu0 0.0
    %279 = vmatpush1.msra.mxu0 %v272
    %280 = vmatprep.subr.mxu0 0.0
    %281 = vmatpush1.msra.mxu0 %v273
    %282 = vmatprep.subr.mxu0 0.0
    %283 = vmatpush1.msra.mxu0 0.0
    %284 = vmatprep.subr.mxu0 0.0
    %285 = vmatpush1.msra.mxu0 0.0
    %286 = vmatprep.subr.mxu0 0.0
    %287 = vmatpush1.msra.mxu0 0.0
    %288 = vmatprep.subr.mxu0 0.0
    %289 = vmatpush1.msra.mxu0 0.0
    %290 = vmatprep.subr.mxu0 0.0
    %291 = vmatpush1.msra.mxu0 0.0
    %292 = vmatprep.subr.mxu0 0.0
    %293 = vmatpush1.msra.mxu0 0.0
    %294 = vmatprep.subr.mxu0 0.0
    %295 = vmatpush1.msra.mxu0 0.0
    %296 = vmatprep.subr.mxu0 0.0
    %297 = vmatpush1.msra.mxu0 0.0
    %298 = vmatprep.subr.mxu0 0.0
    %299 = vmatpush1.msra.mxu0 0.0
    %300 = vmatprep.subr.mxu0 0.0
    %301 = vmatpush1.msra.mxu0 0.0
    %302 = vmatprep.subr.mxu0 0.0
    %303 = vmatpush1.msra.mxu0 0.0
    %304 = vmatprep.subr.mxu0 0.0
    %305 = vmatpush1.msra.mxu0 0.0
    %306 = vmatprep.subr.mxu0 0.0
    %307 = vmatpush1.msra.mxu0 0.0
    %308 = vmatprep.subr.mxu0 0.0
    %309 = vmatpush1.msra.mxu0 0.0
    %310 = vmatprep.subr.mxu0 0.0
    %311 = vmatpush1.msra.mxu0 0.0
    %312 = vmatprep.subr.mxu0 0.0
    %313 = vmatpush1.msra.mxu0 0.0
    %314 = vmatprep.subr.mxu0 0.0
    %315 = vmatpush1.msra.mxu0 0.0
    %316 = vmatprep.subr.mxu0 0.0
    %317 = vmatpush1.msra.mxu0 0.0
    %318 = vmatprep.subr.mxu0 0.0
    %319 = vmatpush1.msra.mxu0 0.0
    %320 = vmatprep.subr.mxu0 0.0
    %321 = vmatpush1.msra.mxu0 0.0
    %322 = vmatprep.subr.mxu0 0.0
    %323 = vmatpush1.msra.mxu0 0.0
    %324 = vmatprep.subr.mxu0 0.0
    %325 = vmatpush1.msra.mxu0 0.0
    %326 = vmatprep.subr.mxu0 0.0
    %327 = vmatpush1.msra.mxu0 0.0
    %328 = vmatprep.subr.mxu0 0.0
    %329 = vmatpush1.msra.mxu0 0.0
    %330 = vmatprep.subr.mxu0 0.0
    %331 = vmatpush1.msra.mxu0 0.0
    %332 = vmatprep.subr.mxu0 0.0
    %333 = vmatpush1.msra.mxu0 0.0
    %334 = vmatprep.subr.mxu0 0.0
    %335 = vmatpush1.msra.mxu0 0.0
    %336 = vmatprep.subr.mxu0 0.0
    %337 = vmatpush1.msra.mxu0 0.0
    %338 = vmatprep.mubr.f32.mxu0 0.0
    %339 = vmatmul.mubr.f32.gmra.mrb[0].mxu0 %v107
    %v340 = vpop.f32.mrb[0].mxu0
    %v341 = vadd.f32 0.0, %v340
    %v342 = vpop.f32.mrb[0].mxu0
    %343 = vmatprep.mubr.f32.mxu0 0.0
    %344 = vmatmul.mubr.f32.gmra.mrb[0].mxu0 %v110
    %v345 = vpop.f32.mrb[0].mxu0
    %v346 = vadd.f32 0.0, %v345
    %v347 = vpop.f32.mrb[0].mxu0
    %348 = vdwg.mxu0
    %349 = vst.msk [vmem:[%s8] sm:$0xff] %vm58, %v341
    %350 = vst.msk [vmem:[%s8 + $0x8] sm:$0xff] %vm58, %v346
    // Predicated region
    $region34: #{basic_transformer_block.9} parent=1 // pred_check
      _
    $region35: #{basic_transformer_block.9} parent=1 // pred_check_branch
      %352 = sbr.rel (0) target = $region37
    $region36: #{basic_transformer_block.9} parent=1 // pred_region
      _
    $region37: #{basic_transformer_block.9} parent=1 // pred_fallthru
      _
    // Predicated region
    $region38: #{basic_transformer_block.9} parent=1 // pred_check
      _
    $region39: #{basic_transformer_block.9} parent=1 // pred_check_branch
      %354 = sbr.rel (0) target = $region41
    $region40: #{basic_transformer_block.9} parent=1 // pred_region
      _
    $region41: #{basic_transformer_block.9} parent=1 // pred_fallthru
      _
    // Predicated region
    $region42: #{basic_transformer_block.9} parent=1 // pred_check
      _
    $region43: #{basic_transformer_block.9} parent=1 // pred_check_branch
      %356 = sbr.rel (0) target = $region45
    $region44: #{basic_transformer_block.9} parent=1 // pred_region
      _
    $region45: #{basic_transformer_block.9} parent=1 // pred_fallthru
      _
    // Predicated region
    $region46: #{basic_transformer_block.9} parent=1 // pred_check
      _
    $region47: #{basic_transformer_block.9} parent=1 // pred_check_branch
      %358 = sbr.rel (0) target = $region49
    $region48: #{basic_transformer_block.9} parent=1 // pred_region
      _
    $region49: #{basic_transformer_block.9} parent=1 // pred_fallthru
      _
    // Predicated region
    $region50: #{basic_transformer_block.9} parent=1 // pred_check
      _
    $region51: #{basic_transformer_block.9} parent=1 // pred_check_branch
      %360 = sbr.rel (0) target = $region53
    $region52: #{basic_transformer_block.9} parent=1 // pred_region
      _
    $region53: #{basic_transformer_block.9} parent=1 // pred_fallthru
      _
    // Predicated region
    $region54: #{basic_transformer_block.9} parent=1 // pred_check
      _
    $region55: #{basic_transformer_block.9} parent=1 // pred_check_branch
      %362 = sbr.rel (0) target = $region57
    $region56: #{basic_transformer_block.9} parent=1 // pred_region
      _
    $region57: #{basic_transformer_block.9} parent=1 // pred_fallthru
      _
    %363 = vsyncpa [#allocation3], 1
    %364 = vsyncpa [#allocation5], 1

// kernel: basic_transformer_block.13
$region0: #{basic_transformer_block.13}
  #allocation0 [shape = 'u32[]', space=smem, size = 0x4, offset = 0x4, fixed_abs, tag = 'smem constant byte address 0x4 - core index']
  #allocation1 [shape = 'u32[144,128]{1,0:T(1,128)}', space=vmem, size = 0x12000, scoped, tag = 'internal scratch']
  %s0 = inlined_call_operand.vmem [shape: f32[16,16], index: 0, kind: input, shape index: {}]
  %s1 = inlined_call_operand.vmem [shape: f32[16,32], index: 1, kind: input, shape index: {}]
  %s2 = inlined_call_operand.vmem [shape: f32[16,32], index: 2, kind: input, shape index: {}]
  %s3 = inlined_call_operand.vmem [shape: f32[16,32], index: 3, kind: output, shape index: {0}]
  %s4 = inlined_call_operand.vmem [shape: f32[16,32], index: 4, kind: output, shape index: {1}]
  %5 = xla_tuple %s3, %s4
  %s6 = sld [smem:[#allocation0]]
  $region30: #{basic_transformer_block.13} parent=0
    _
  %s8 = ssub.s32 1, %s6
  %s9 = scalar_select 0, %s8, %s6
  // Predicated region
  $region2: #{basic_transformer_block.13} parent=0 // pred_check
    _
  $region3: #{basic_transformer_block.13} parent=0 // pred_check_branch
    %11 = sbr.rel (0) target = $region5
  $region4: #{basic_transformer_block.13} parent=0 // pred_region
    _
  $region5: #{basic_transformer_block.13} parent=0 // pred_fallthru
    _
  // Predicated region
  $region6: #{basic_transformer_block.13} parent=0 // pred_check
    _
  $region7: #{basic_transformer_block.13} parent=0 // pred_check_branch
    %13 = sbr.rel (0) target = $region9
  $region8: #{basic_transformer_block.13} parent=0 // pred_region
    _
  $region9: #{basic_transformer_block.13} parent=0 // pred_fallthru
    _
  // Predicated region
  $region10: #{basic_transformer_block.13} parent=0 // pred_check
    _
  $region11: #{basic_transformer_block.13} parent=0 // pred_check_branch
    %15 = sbr.rel (0) target = $region13
  $region12: #{basic_transformer_block.13} parent=0 // pred_region
    _
  $region13: #{basic_transformer_block.13} parent=0 // pred_fallthru
    _
  %v16 = vld [vmem:[%s0] sm:$0xff]
  %v17 = vld [vmem:[%s0 + $0x8] sm:$0xff]
  %v18 = vld [vmem:[%s1] sm:$0xff]
  %v19 = vld [vmem:[%s1 + $0x8] sm:$0xff]
  %vm20 = vcmask 130048
  %v22 = vsel %vm20, %v16, 0
  %v25 = vsel %vm20, %v17, 0
  %27 = vmatprep.subr.mxu0 0.0
  %28 = vmatpush1.msra.mxu0 %v18
  %29 = vmatprep.subr.mxu0 0.0
  %30 = vmatpush1.msra.mxu0 %v19
  %31 = vmatprep.subr.mxu0 0.0
  %32 = vmatpush1.msra.mxu0 0.0
  %33 = vmatprep.subr.mxu0 0.0
  %34 = vmatpush1.msra.mxu0 0.0
  %35 = vmatprep.subr.mxu0 0.0
  %36 = vmatpush1.msra.mxu0 0.0
  %37 = vmatprep.subr.mxu0 0.0
  %38 = vmatpush1.msra.mxu0 0.0
  %39 = vmatprep.subr.mxu0 0.0
  %40 = vmatpush1.msra.mxu0 0.0
  %41 = vmatprep.subr.mxu0 0.0
  %42 = vmatpush1.msra.mxu0 0.0
  %43 = vmatprep.subr.mxu0 0.0
  %44 = vmatpush1.msra.mxu0 0.0
  %45 = vmatprep.subr.mxu0 0.0
  %46 = vmatpush1.msra.mxu0 0.0
  %47 = vmatprep.subr.mxu0 0.0
  %48 = vmatpush1.msra.mxu0 0.0
  %49 = vmatprep.subr.mxu0 0.0
  %50 = vmatpush1.msra.mxu0 0.0
  %51 = vmatprep.subr.mxu0 0.0
  %52 = vmatpush1.msra.mxu0 0.0
  %53 = vmatprep.subr.mxu0 0.0
  %54 = vmatpush1.msra.mxu0 0.0
  %55 = vmatprep.subr.mxu0 0.0
  %56 = vmatpush1.msra.mxu0 0.0
  %57 = vmatprep.subr.mxu0 0.0
  %58 = vmatpush1.msra.mxu0 0.0
  %59 = vmatprep.subr.mxu0 0.0
  %60 = vmatpush1.msra.mxu0 0.0
  %61 = vmatprep.subr.mxu0 0.0
  %62 = vmatpush1.msra.mxu0 0.0
  %63 = vmatprep.subr.mxu0 0.0
  %64 = vmatpush1.msra.mxu0 0.0
  %65 = vmatprep.subr.mxu0 0.0
  %66 = vmatpush1.msra.mxu0 0.0
  %67 = vmatprep.subr.mxu0 0.0
  %68 = vmatpush1.msra.mxu0 0.0
  %69 = vmatprep.subr.mxu0 0.0
  %70 = vmatpush1.msra.mxu0 0.0
  %71 = vmatprep.subr.mxu0 0.0
  %72 = vmatpush1.msra.mxu0 0.0
  %73 = vmatprep.subr.mxu0 0.0
  %74 = vmatpush1.msra.mxu0 0.0
  %75 = vmatprep.subr.mxu0 0.0
  %76 = vmatpush1.msra.mxu0 0.0
  %77 = vmatprep.subr.mxu0 0.0
  %78 = vmatpush1.msra.mxu0 0.0
  %79 = vmatprep.subr.mxu0 0.0
  %80 = vmatpush1.msra.mxu0 0.0
  %81 = vmatprep.subr.mxu0 0.0
  %82 = vmatpush1.msra.mxu0 0.0
  %83 = vmatprep.subr.mxu0 0.0
  %84 = vmatpush1.msra.mxu0 0.0
  %85 = vmatprep.subr.mxu0 0.0
  %86 = vmatpush1.msra.mxu0 0.0
  %87 = vmatprep.subr.mxu0 0.0
  %88 = vmatpush1.msra.mxu0 0.0
  %89 = vmatprep.subr.mxu0 0.0
  %90 = vmatpush1.msra.mxu0 0.0
  %91 = vmatprep.mubr.f32.mxu0 0.0
  %92 = vmatmul.mubr.f32.gmra.mrb[0].mxu0 %v22
  %v93 = vpop.f32.mrb[0].mxu0
  %v94 = vadd.f32 0.0, %v93
  %v95 = vpop.f32.mrb[0].mxu0
  %96 = vmatprep.mubr.f32.mxu0 0.0
  %97 = vmatmul.mubr.f32.gmra.mrb[0].mxu0 %v25
  %v98 = vpop.f32.mrb[0].mxu0
  %v99 = vadd.f32 0.0, %v98
  %v100 = vpop.f32.mrb[0].mxu0
  %101 = vdwg.mxu0
  %vm102 = vcmask 261120
  %103 = vst.msk [vmem:[%s3] sm:$0xff] %vm102, %v94
  %104 = vst.msk [vmem:[%s3 + $0x8] sm:$0xff] %vm102, %v99
  %v105 = vld [vmem:[%s2] sm:$0xff]
  %v106 = vld [vmem:[%s2 + $0x8] sm:$0xff]
  %107 = vmatprep.subr.mxu0 0.0
  %108 = vmatpush1.msra.mxu0 %v105
  %109 = vmatprep.subr.mxu0 0.0
  %110 = vmatpush1.msra.mxu0 %v106
  %111 = vmatprep.subr.mxu0 0.0
  %112 = vmatpush1.msra.mxu0 0.0
  %113 = vmatprep.subr.mxu0 0.0
  %114 = vmatpush1.msra.mxu0 0.0
  %115 = vmatprep.subr.mxu0 0.0
  %116 = vmatpush1.msra.mxu0 0.0
  %117 = vmatprep.subr.mxu0 0.0
  %118 = vmatpush1.msra.mxu0 0.0
  %119 = vmatprep.subr.mxu0 0.0
  %120 = vmatpush1.msra.mxu0 0.0
  %121 = vmatprep.subr.mxu0 0.0
  %122 = vmatpush1.msra.mxu0 0.0
  %123 = vmatprep.subr.mxu0 0.0
  %124 = vmatpush1.msra.mxu0 0.0
  %125 = vmatprep.subr.mxu0 0.0
  %126 = vmatpush1.msra.mxu0 0.0
  %127 = vmatprep.subr.mxu0 0.0
  %128 = vmatpush1.msra.mxu0 0.0
  %129 = vmatprep.subr.mxu0 0.0
  %130 = vmatpush1.msra.mxu0 0.0
  %131 = vmatprep.subr.mxu0 0.0
  %132 = vmatpush1.msra.mxu0 0.0
  %133 = vmatprep.subr.mxu0 0.0
  %134 = vmatpush1.msra.mxu0 0.0
  %135 = vmatprep.subr.mxu0 0.0
  %136 = vmatpush1.msra.mxu0 0.0
  %137 = vmatprep.subr.mxu0 0.0
  %138 = vmatpush1.msra.mxu0 0.0
  %139 = vmatprep.subr.mxu0 0.0
  %140 = vmatpush1.msra.mxu0 0.0
  %141 = vmatprep.subr.mxu0 0.0
  %142 = vmatpush1.msra.mxu0 0.0
  %143 = vmatprep.subr.mxu0 0.0
  %144 = vmatpush1.msra.mxu0 0.0
  %145 = vmatprep.subr.mxu0 0.0
  %146 = vmatpush1.msra.mxu0 0.0
  %147 = vmatprep.subr.mxu0 0.0
  %148 = vmatpush1.msra.mxu0 0.0
  %149 = vmatprep.subr.mxu0 0.0
  %150 = vmatpush1.msra.mxu0 0.0
  %151 = vmatprep.subr.mxu0 0.0
  %152 = vmatpush1.msra.mxu0 0.0
  %153 = vmatprep.subr.mxu0 0.0
  %154 = vmatpush1.msra.mxu0 0.0
  %155 = vmatprep.subr.mxu0 0.0
  %156 = vmatpush1.msra.mxu0 0.0
  %157 = vmatprep.subr.mxu0 0.0
  %158 = vmatpush1.msra.mxu0 0.0
  %159 = vmatprep.subr.mxu0 0.0
  %160 = vmatpush1.msra.mxu0 0.0
  %161 = vmatprep.subr.mxu0 0.0
  %162 = vmatpush1.msra.mxu0 0.0
  %163 = vmatprep.subr.mxu0 0.0
  %164 = vmatpush1.msra.mxu0 0.0
  %165 = vmatprep.subr.mxu0 0.0
  %166 = vmatpush1.msra.mxu0 0.0
  %167 = vmatprep.subr.mxu0 0.0
  %168 = vmatpush1.msra.mxu0 0.0
  %169 = vmatprep.subr.mxu0 0.0
  %170 = vmatpush1.msra.mxu0 0.0
  %171 = vmatprep.mubr.f32.mxu0 0.0
  %172 = vmatmul.mubr.f32.gmra.mrb[0].mxu0 %v22
  %v173 = vpop.f32.mrb[0].mxu0
  %v174 = vadd.f32 0.0, %v173
  %v175 = vpop.f32.mrb[0].mxu0
  %176 = vmatprep.mubr.f32.mxu0 0.0
  %177 = vmatmul.mubr.f32.gmra.mrb[0].mxu0 %v25
  %v178 = vpop.f32.mrb[0].mxu0
  %v179 = vadd.f32 0.0, %v178
  %v180 = vpop.f32.mrb[0].mxu0
  %181 = vdwg.mxu0
  %182 = vst.msk [vmem:[%s4] sm:$0xff] %vm102, %v174
  %183 = vst.msk [vmem:[%s4 + $0x8] sm:$0xff] %vm102, %v179
  // Predicated region
  $region14: #{basic_transformer_block.13} parent=0 // pred_check
    _
  $region15: #{basic_transformer_block.13} parent=0 // pred_check_branch
    %185 = sbr.rel (0) target = $region17
  $region16: #{basic_transformer_block.13} parent=0 // pred_region
    _
  $region17: #{basic_transformer_block.13} parent=0 // pred_fallthru
    _
  // Predicated region
  $region18: #{basic_transformer_block.13} parent=0 // pred_check
    _
  $region19: #{basic_transformer_block.13} parent=0 // pred_check_branch
    %187 = sbr.rel (0) target = $region21
  $region20: #{basic_transformer_block.13} parent=0 // pred_region
    _
  $region21: #{basic_transformer_block.13} parent=0 // pred_fallthru
    _
  // Predicated region
  $region22: #{basic_transformer_block.13} parent=0 // pred_check
    _
  $region23: #{basic_transformer_block.13} parent=0 // pred_check_branch
    %189 = sbr.rel (0) target = $region25
  $region24: #{basic_transformer_block.13} parent=0 // pred_region
    _
  $region25: #{basic_transformer_block.13} parent=0 // pred_fallthru
    _
  // Predicated region
  $region26: #{basic_transformer_block.13} parent=0 // pred_check
    _
  $region27: #{basic_transformer_block.13} parent=0 // pred_check_branch
    %191 = sbr.rel (0) target = $region29
  $region28: #{basic_transformer_block.13} parent=0 // pred_region
    _
  $region29: #{basic_transformer_block.13} parent=0 // pred_fallthru
    _

// kernel: basic_transformer_block.16
$region0: #{basic_transformer_block.16}
  #allocation0 [shape = 'u32[]', space=smem, size = 0x4, offset = 0x4, fixed_abs, tag = 'smem constant byte address 0x4 - core index']
  #allocation1 [shape = 'u32[144,128]{1,0:T(1,128)}', space=vmem, size = 0x12000, scoped, tag = 'internal scratch']
  %s0 = inlined_call_operand.vmem [shape: f32[16,32], index: 0, kind: input, shape index: {}]
  %s1 = inlined_call_operand.vmem [shape: f32[1,32], index: 1, kind: input, shape index: {}]
  %s2 = inlined_call_operand.vmem [shape: f32[1,32], index: 2, kind: input, shape index: {}]
  %s3 = inlined_call_operand.vmem [shape: f32[32,128], index: 3, kind: input, shape index: {}]
  %s4 = inlined_call_operand.vmem [shape: f32[32,128], index: 4, kind: input, shape index: {}]
  %s5 = inlined_call_operand.vmem [shape: f32[1,128], index: 5, kind: input, shape index: {}]
  %s6 = inlined_call_operand.vmem [shape: f32[1,128], index: 6, kind: input, shape index: {}]
  %s7 = inlined_call_operand.vmem [shape: f32[16,128], index: 7, kind: output, shape index: {}]
  %s8 = sld [smem:[#allocation0]]
  $region38: #{basic_transformer_block.16} parent=0
    _
  %s10 = ssub.s32 1, %s8
  %s11 = scalar_select 0, %s10, %s8
  // Predicated region
  $region2: #{basic_transformer_block.16} parent=0 // pred_check
    _
  $region3: #{basic_transformer_block.16} parent=0 // pred_check_branch
    %13 = sbr.rel (0) target = $region5
  $region4: #{basic_transformer_block.16} parent=0 // pred_region
    _
  $region5: #{basic_transformer_block.16} parent=0 // pred_fallthru
    _
  // Predicated region
  $region6: #{basic_transformer_block.16} parent=0 // pred_check
    _
  $region7: #{basic_transformer_block.16} parent=0 // pred_check_branch
    %15 = sbr.rel (0) target = $region9
  $region8: #{basic_transformer_block.16} parent=0 // pred_region
    _
  $region9: #{basic_transformer_block.16} parent=0 // pred_fallthru
    _
  // Predicated region
  $region10: #{basic_transformer_block.16} parent=0 // pred_check
    _
  $region11: #{basic_transformer_block.16} parent=0 // pred_check_branch
    %17 = sbr.rel (0) target = $region13
  $region12: #{basic_transformer_block.16} parent=0 // pred_region
    _
  $region13: #{basic_transformer_block.16} parent=0 // pred_fallthru
    _
  // Predicated region
  $region14: #{basic_transformer_block.16} parent=0 // pred_check
    _
  $region15: #{basic_transformer_block.16} parent=0 // pred_check_branch
    %19 = sbr.rel (0) target = $region17
  $region16: #{basic_transformer_block.16} parent=0 // pred_region
    _
  $region17: #{basic_transformer_block.16} parent=0 // pred_fallthru
    _
  // Predicated region
  $region18: #{basic_transformer_block.16} parent=0 // pred_check
    _
  $region19: #{basic_transformer_block.16} parent=0 // pred_check_branch
    %21 = sbr.rel (0) target = $region21
  $region20: #{basic_transformer_block.16} parent=0 // pred_region
    _
  $region21: #{basic_transformer_block.16} parent=0 // pred_fallthru
    _
  // Predicated region
  $region22: #{basic_transformer_block.16} parent=0 // pred_check
    _
  $region23: #{basic_transformer_block.16} parent=0 // pred_check_branch
    %23 = sbr.rel (0) target = $region25
  $region24: #{basic_transformer_block.16} parent=0 // pred_region
    _
  $region25: #{basic_transformer_block.16} parent=0 // pred_fallthru
    _
  // Predicated region
  $region26: #{basic_transformer_block.16} parent=0 // pred_check
    _
  $region27: #{basic_transformer_block.16} parent=0 // pred_check_branch
    %25 = sbr.rel (0) target = $region29
  $region28: #{basic_transformer_block.16} parent=0 // pred_region
    _
  $region29: #{basic_transformer_block.16} parent=0 // pred_fallthru
    _
  %v26 = vld [vmem:[%s0] sm:$0xff]
  %v27 = vld [vmem:[%s0 + $0x8] sm:$0xff]
  %v28 = vld [vmem:[%s1] sm:$0x1]
  %v29 = vld [vmem:[%s2] sm:$0x1]
  %vm30 = vcmask 261120
  %v31 = vsel %vm30, %v26, 0.0
  %32 = vadd.xlane.f32.xlu0 %v31
  %v33 = vpop.xlane.xlu0 %32
  %v34 = vsel %vm30, %v27, 0.0
  %35 = vadd.xlane.f32.xlu0 %v34
  %v36 = vpop.xlane.xlu0 %35
  %v37 = vrcp.pop 32.0
  %v38 = vmul.f32 %v33, %v37
  %v39 = vmul.f32 %v36, %v37
  %v40 = vsub.f32 %v26, %v38
  %v41 = vsub.f32 %v27, %v39
  %v42 = vmul.f32 %v40, %v40
  %v43 = vmul.f32 %v41, %v41
  %v44 = vsel %vm30, %v42, 0.0
  %45 = vadd.xlane.f32.xlu0 %v44
  %v46 = vpop.xlane.xlu0 %45
  %v47 = vsel %vm30, %v43, 0.0
  %48 = vadd.xlane.f32.xlu0 %v47
  %v49 = vpop.xlane.xlu0 %48
  %v50 = vmul.f32 %v46, %v37
  %v51 = vmul.f32 %v49, %v37
  %v52 = vadd.f32 %v50, 1e-05
  %v53 = vadd.f32 %v51, 1e-05
  %v54 = vrsqrt.pop %v52
  %v55 = vrsqrt.pop %v53
  %v56 = vmul.f32 %v40, %v54
  %v57 = vmul.f32 %v41, %v55
  %v59 = vlaneseq
  %v60 = vshrl.u32 %v59, 7
  %v61 = vsub.s32 0, %v60
  %v62 = vrot.slane %v28, %v61
  %v64 = vmul.f32 %v56, %v62
  %v65 = vmul.f32 %v57, %v62
  %v67 = vlaneseq
  %v68 = vshrl.u32 %v67, 7
  %v69 = vsub.s32 0, %v68
  %v70 = vrot.slane %v29, %v69
  %v72 = vadd.f32 %v64, %v70
  %v73 = vadd.f32 %v65, %v70
  %v74 = vld [vmem:[%s3] sm:$0xff]
  %v75 = vld [vmem:[%s3 + $0x8] sm:$0xff]
  %v76 = vld [vmem:[%s3 + $0x10] sm:$0xff]
  %v77 = vld [vmem:[%s3 + $0x18] sm:$0xff]
  %v78 = vld [vmem:[%s5] sm:$0x1]
  %v80 = vlaneseq
  %v81 = vshrl.u32 %v80, 7
  %v82 = vsub.s32 0, %v81
  %v83 = vrot.slane %v78, %v82
  %v86 = vsel %vm30, %v72, 0
  %v89 = vsel %vm30, %v73, 0
  %91 = vmatprep.subr.mxu0 0.0
  %92 = vmatpush1.msra.mxu0 %v74
  %93 = vmatprep.subr.mxu0 0.0
  %94 = vmatpush1.msra.mxu0 %v75
  %95 = vmatprep.subr.mxu0 0.0
  %96 = vmatpush1.msra.mxu0 %v76
  %97 = vmatprep.subr.mxu0 0.0
  %98 = vmatpush1.msra.mxu0 %v77
  %99 = vmatprep.subr.mxu0 0.0
  %100 = vmatpush1.msra.mxu0 0.0
  %101 = vmatprep.subr.mxu0 0.0
  %102 = vmatpush1.msra.mxu0 0.0
  %103 = vmatprep.subr.mxu0 0.0
  %104 = vmatpush1.msra.mxu0 0.0
  %105 = vmatprep.subr.mxu0 0.0
  %106 = vmatpush1.msra.mxu0 0.0
  %107 = vmatprep.subr.mxu0 0.0
  %108 = vmatpush1.msra.mxu0 0.0
  %109 = vmatprep.subr.mxu0 0.0
  %110 = vmatpush1.msra.mxu0 0.0
  %111 = vmatprep.subr.mxu0 0.0
  %112 = vmatpush1.msra.mxu0 0.0
  %113 = vmatprep.subr.mxu0 0.0
  %114 = vmatpush1.msra.mxu0 0.0
  %115 = vmatprep.subr.mxu0 0.0
  %116 = vmatpush1.msra.mxu0 0.0
  %117 = vmatprep.subr.mxu0 0.0
  %118 = vmatpush1.msra.mxu0 0.0
  %119 = vmatprep.subr.mxu0 0.0
  %120 = vmatpush1.msra.mxu0 0.0
  %121 = vmatprep.subr.mxu0 0.0
  %122 = vmatpush1.msra.mxu0 0.0
  %123 = vmatprep.subr.mxu0 0.0
  %124 = vmatpush1.msra.mxu0 0.0
  %125 = vmatprep.subr.mxu0 0.0
  %126 = vmatpush1.msra.mxu0 0.0
  %127 = vmatprep.subr.mxu0 0.0
  %128 = vmatpush1.msra.mxu0 0.0
  %129 = vmatprep.subr.mxu0 0.0
  %130 = vmatpush1.msra.mxu0 0.0
  %131 = vmatprep.subr.mxu0 0.0
  %132 = vmatpush1.msra.mxu0 0.0
  %133 = vmatprep.subr.mxu0 0.0
  %134 = vmatpush1.msra.mxu0 0.0
  %135 = vmatprep.subr.mxu0 0.0
  %136 = vmatpush1.msra.mxu0 0.0
  %137 = vmatprep.subr.mxu0 0.0
  %138 = vmatpush1.msra.mxu0 0.0
  %139 = vmatprep.subr.mxu0 0.0
  %140 = vmatpush1.msra.mxu0 0.0
  %141 = vmatprep.subr.mxu0 0.0
  %142 = vmatpush1.msra.mxu0 0.0
  %143 = vmatprep.subr.mxu0 0.0
  %144 = vmatpush1.msra.mxu0 0.0
  %145 = vmatprep.subr.mxu0 0.0
  %146 = vmatpush1.msra.mxu0 0.0
  %147 = vmatprep.subr.mxu0 0.0
  %148 = vmatpush1.msra.mxu0 0.0
  %149 = vmatprep.subr.mxu0 0.0
  %150 = vmatpush1.msra.mxu0 0.0
  %151 = vmatprep.subr.mxu0 0.0
  %152 = vmatpush1.msra.mxu0 0.0
  %153 = vmatprep.subr.mxu0 0.0
  %154 = vmatpush1.msra.mxu0 0.0
  %155 = vmatprep.mubr.f32.mxu0 0.0
  %156 = vmatmul.mubr.f32.gmra.mrb[0].mxu0 %v86
  %v157 = vpop.f32.mrb[0].mxu0
  %v158 = vadd.f32 %v83, %v157
  %v159 = vpop.f32.mrb[0].mxu0
  %160 = vmatprep.mubr.f32.mxu0 0.0
  %161 = vmatmul.mubr.f32.gmra.mrb[0].mxu0 %v89
  %v162 = vpop.f32.mrb[0].mxu0
  %v163 = vadd.f32 %v83, %v162
  %v164 = vpop.f32.mrb[0].mxu0
  %165 = vdwg.mxu0
  %v166 = vld [vmem:[%s4] sm:$0xff]
  %v167 = vld [vmem:[%s4 + $0x8] sm:$0xff]
  %v168 = vld [vmem:[%s4 + $0x10] sm:$0xff]
  %v169 = vld [vmem:[%s4 + $0x18] sm:$0xff]
  %v170 = vld [vmem:[%s6] sm:$0x1]
  %v172 = vlaneseq
  %v173 = vshrl.u32 %v172, 7
  %v174 = vsub.s32 0, %v173
  %v175 = vrot.slane %v170, %v174
  %177 = vmatprep.subr.mxu0 0.0
  %178 = vmatpush1.msra.mxu0 %v166
  %179 = vmatprep.subr.mxu0 0.0
  %180 = vmatpush1.msra.mxu0 %v167
  %181 = vmatprep.subr.mxu0 0.0
  %182 = vmatpush1.msra.mxu0 %v168
  %183 = vmatprep.subr.mxu0 0.0
  %184 = vmatpush1.msra.mxu0 %v169
  %185 = vmatprep.subr.mxu0 0.0
  %186 = vmatpush1.msra.mxu0 0.0
  %187 = vmatprep.subr.mxu0 0.0
  %188 = vmatpush1.msra.mxu0 0.0
  %189 = vmatprep.subr.mxu0 0.0
  %190 = vmatpush1.msra.mxu0 0.0
  %191 = vmatprep.subr.mxu0 0.0
  %192 = vmatpush1.msra.mxu0 0.0
  %193 = vmatprep.subr.mxu0 0.0
  %194 = vmatpush1.msra.mxu0 0.0
  %195 = vmatprep.subr.mxu0 0.0
  %196 = vmatpush1.msra.mxu0 0.0
  %197 = vmatprep.subr.mxu0 0.0
  %198 = vmatpush1.msra.mxu0 0.0
  %199 = vmatprep.subr.mxu0 0.0
  %200 = vmatpush1.msra.mxu0 0.0
  %201 = vmatprep.subr.mxu0 0.0
  %202 = vmatpush1.msra.mxu0 0.0
  %203 = vmatprep.subr.mxu0 0.0
  %204 = vmatpush1.msra.mxu0 0.0
  %205 = vmatprep.subr.mxu0 0.0
  %206 = vmatpush1.msra.mxu0 0.0
  %207 = vmatprep.subr.mxu0 0.0
  %208 = vmatpush1.msra.mxu0 0.0
  %209 = vmatprep.subr.mxu0 0.0
  %210 = vmatpush1.msra.mxu0 0.0
  %211 = vmatprep.subr.mxu0 0.0
  %212 = vmatpush1.msra.mxu0 0.0
  %213 = vmatprep.subr.mxu0 0.0
  %214 = vmatpush1.msra.mxu0 0.0
  %215 = vmatprep.subr.mxu0 0.0
  %216 = vmatpush1.msra.mxu0 0.0
  %217 = vmatprep.subr.mxu0 0.0
  %218 = vmatpush1.msra.mxu0 0.0
  %219 = vmatprep.subr.mxu0 0.0
  %220 = vmatpush1.msra.mxu0 0.0
  %221 = vmatprep.subr.mxu0 0.0
  %222 = vmatpush1.msra.mxu0 0.0
  %223 = vmatprep.subr.mxu0 0.0
  %224 = vmatpush1.msra.mxu0 0.0
  %225 = vmatprep.subr.mxu0 0.0
  %226 = vmatpush1.msra.mxu0 0.0
  %227 = vmatprep.subr.mxu0 0.0
  %228 = vmatpush1.msra.mxu0 0.0
  %229 = vmatprep.subr.mxu0 0.0
  %230 = vmatpush1.msra.mxu0 0.0
  %231 = vmatprep.subr.mxu0 0.0
  %232 = vmatpush1.msra.mxu0 0.0
  %233 = vmatprep.subr.mxu0 0.0
  %234 = vmatpush1.msra.mxu0 0.0
  %235 = vmatprep.subr.mxu0 0.0
  %236 = vmatpush1.msra.mxu0 0.0
  %237 = vmatprep.subr.mxu0 0.0
  %238 = vmatpush1.msra.mxu0 0.0
  %239 = vmatprep.subr.mxu0 0.0
  %240 = vmatpush1.msra.mxu0 0.0
  %241 = vmatprep.mubr.f32.mxu0 0.0
  %242 = vmatmul.mubr.f32.gmra.mrb[0].mxu0 %v86
  %v243 = vpop.f32.mrb[0].mxu0
  %v244 = vadd.f32 %v175, %v243
  %v245 = vpop.f32.mrb[0].mxu0
  %246 = vmatprep.mubr.f32.mxu0 0.0
  %247 = vmatmul.mubr.f32.gmra.mrb[0].mxu0 %v89
  %v248 = vpop.f32.mrb[0].mxu0
  %v249 = vadd.f32 %v175, %v248
  %v250 = vpop.f32.mrb[0].mxu0
  %251 = vdwg.mxu0
  %v252 = vmul.f32 %v244, 0.5
  %v253 = vmul.f32 %v249, 0.5
  %v254 = vmul.f32 %v244, 0.70710677
  %v255 = vmul.f32 %v249, 0.70710677
  %v256 = verf.f32.pop %v254
  %v257 = verf.f32.pop %v255
  %v258 = vadd.f32 %v256, 1.0
  %v259 = vadd.f32 %v257, 1.0
  %v260 = vmul.f32 %v252, %v258
  %v261 = vmul.f32 %v253, %v259
  %v262 = vmul.f32 %v158, %v260
  %v263 = vmul.f32 %v163, %v261
  %264 = vst [vmem:[%s7] sm:$0xff] %v262
  %265 = vst [vmem:[%s7 + $0x8] sm:$0xff] %v263
  // Predicated region
  $region30: #{basic_transformer_block.16} parent=0 // pred_check
    _
  $region31: #{basic_transformer_block.16} parent=0 // pred_check_branch
    %267 = sbr.rel (0) target = $region33
  $region32: #{basic_transformer_block.16} parent=0 // pred_region
    _
  $region33: #{basic_transformer_block.16} parent=0 // pred_fallthru
    _
  // Predicated region
  $region34: #{basic_transformer_block.16} parent=0 // pred_check
    _
  $region35: #{basic_transformer_block.16} parent=0 // pred_check_branch
    %269 = sbr.rel (0) target = $region37
  $region36: #{basic_transformer_block.16} parent=0 // pred_region
    _
  $region37: #{basic_transformer_block.16} parent=0 // pred_fallthru
    _

// kernel: basic_transformer_block.17
$region0: #{basic_transformer_block.17}
  #allocation0 [shape = 'u32[]', space=smem, size = 0x4, offset = 0x4, fixed_abs, tag = 'smem constant byte address 0x4 - core index']
  #allocation1 [shape = 'u32[144,128]{1,0:T(1,128)}', space=vmem, size = 0x12000, scoped, tag = 'internal scratch']
  #allocation2 [shape = 'f32[16,32]{1,0:T(8,128)}', space=vmem, size = 0x2000, scoped, tag = 'scratch operand']
  %s0 = inlined_call_operand.vmem [shape: f32[16,128], index: 0, kind: input, shape index: {}]
  %s1 = inlined_call_operand.vmem [shape: f32[128,32], index: 1, kind: input, shape index: {}]
  %s2 = inlined_call_operand.vmem [shape: f32[1,32], index: 2, kind: input, shape index: {}]
  %s3 = inlined_call_operand.vmem [shape: f32[16,32], index: 3, kind: input, shape index: {}]
  %s4 = inlined_call_operand.hbm [shape: f32[16,32], index: 4, kind: output, shape index: {}]
  %s5 = sld [smem:[#allocation0]]
  $region34: #{basic_transformer_block.17} parent=0
    _
  %s7 = ssub.s32 1, %s5
  %s8 = scalar_select 0, %s7, %s5
  $region1: #{basic_transformer_block.17} parent=0
    #allocation3 [shape = 'u8[8192]{0}', space=vmem, size = 0x2000, scoped, tag = 'output window, operand 0, single buffered']
    #allocation4 [shape = 's32[1]{0}', space=sflag, size = 0x4, scoped, tag = 'scoped memory for basic_transformer_block.17']
    %9 = vsyncpa [#allocation4], 0
    // Predicated region
    $region2: #{basic_transformer_block.17} parent=1 // pred_check
      _
    $region3: #{basic_transformer_block.17} parent=1 // pred_check_branch
      %11 = sbr.rel (0) target = $region5
    $region4: #{basic_transformer_block.17} parent=1 // pred_region
      _
    $region5: #{basic_transformer_block.17} parent=1 // pred_fallthru
      _
    // Predicated region
    $region6: #{basic_transformer_block.17} parent=1 // pred_check
      _
    $region7: #{basic_transformer_block.17} parent=1 // pred_check_branch
      %13 = sbr.rel (0) target = $region9
    $region8: #{basic_transformer_block.17} parent=1 // pred_region
      _
    $region9: #{basic_transformer_block.17} parent=1 // pred_fallthru
      _
    // Predicated region
    $region10: #{basic_transformer_block.17} parent=1 // pred_check
      _
    $region11: #{basic_transformer_block.17} parent=1 // pred_check_branch
      %15 = sbr.rel (0) target = $region13
    $region12: #{basic_transformer_block.17} parent=1 // pred_region
      _
    $region13: #{basic_transformer_block.17} parent=1 // pred_fallthru
      _
    // Predicated region
    $region14: #{basic_transformer_block.17} parent=1 // pred_check
      _
    $region15: #{basic_transformer_block.17} parent=1 // pred_check_branch
      %17 = sbr.rel (0) target = $region17
    $region16: #{basic_transformer_block.17} parent=1 // pred_region
      _
    $region17: #{basic_transformer_block.17} parent=1 // pred_fallthru
      _
    %p18 = scmp.eq.s32.totalorder 0, 0
    // Predicated region
    $region18: #{basic_transformer_block.17} parent=1 // pred_check
      %p19 = pneg %p18
    $region19: #{basic_transformer_block.17} parent=1 // pred_check_branch
      %21 = sbr.rel (%p19) target = $region21
    $region20: #{basic_transformer_block.17} parent=1 // pred_region
      %vm22 = vcmask 261120
      %23 = vst.msk [vmem:[#allocation2] sm:$0xff] %vm22, 0.0
      %24 = vst.msk [vmem:[#allocation2 + $0x8] sm:$0xff] %vm22, 0.0
    $region21: #{basic_transformer_block.17} parent=1 // pred_fallthru
      _
    %v25 = vld [vmem:[#allocation2] sm:$0xff]
    %v26 = vld [vmem:[#allocation2 + $0x8] sm:$0xff]
    %v27 = vld [vmem:[%s0] sm:$0xff]
    %v28 = vld [vmem:[%s0 + $0x8] sm:$0xff]
    %v29 = vld [vmem:[%s1] sm:$0xff]
    %v30 = vld [vmem:[%s1 + $0x8] sm:$0xff]
    %v31 = vld [vmem:[%s1 + $0x10] sm:$0xff]
    %v32 = vld [vmem:[%s1 + $0x18] sm:$0xff]
    %v33 = vld [vmem:[%s1 + $0x20] sm:$0xff]
    %v34 = vld [vmem:[%s1 + $0x28] sm:$0xff]
    %v35 = vld [vmem:[%s1 + $0x30] sm:$0xff]
    %v36 = vld [vmem:[%s1 + $0x38] sm:$0xff]
    %v37 = vld [vmem:[%s1 + $0x40] sm:$0xff]
    %v38 = vld [vmem:[%s1 + $0x48] sm:$0xff]
    %v39 = vld [vmem:[%s1 + $0x50] sm:$0xff]
    %v40 = vld [vmem:[%s1 + $0x58] sm:$0xff]
    %v41 = vld [vmem:[%s1 + $0x60] sm:$0xff]
    %v42 = vld [vmem:[%s1 + $0x68] sm:$0xff]
    %v43 = vld [vmem:[%s1 + $0x70] sm:$0xff]
    %v44 = vld [vmem:[%s1 + $0x78] sm:$0xff]
    %45 = vmatprep.subr.mxu0 0.0
    %46 = vmatpush1.msra.mxu0 %v29
    %47 = vmatprep.subr.mxu0 0.0
    %48 = vmatpush1.msra.mxu0 %v30
    %49 = vmatprep.subr.mxu0 0.0
    %50 = vmatpush1.msra.mxu0 %v31
    %51 = vmatprep.subr.mxu0 0.0
    %52 = vmatpush1.msra.mxu0 %v32
    %53 = vmatprep.subr.mxu0 0.0
    %54 = vmatpush1.msra.mxu0 %v33
    %55 = vmatprep.subr.mxu0 0.0
    %56 = vmatpush1.msra.mxu0 %v34
    %57 = vmatprep.subr.mxu0 0.0
    %58 = vmatpush1.msra.mxu0 %v35
    %59 = vmatprep.subr.mxu0 0.0
    %60 = vmatpush1.msra.mxu0 %v36
    %61 = vmatprep.subr.mxu0 0.0
    %62 = vmatpush1.msra.mxu0 %v37
    %63 = vmatprep.subr.mxu0 0.0
    %64 = vmatpush1.msra.mxu0 %v38
    %65 = vmatprep.subr.mxu0 0.0
    %66 = vmatpush1.msra.mxu0 %v39
    %67 = vmatprep.subr.mxu0 0.0
    %68 = vmatpush1.msra.mxu0 %v40
    %69 = vmatprep.subr.mxu0 0.0
    %70 = vmatpush1.msra.mxu0 %v41
    %71 = vmatprep.subr.mxu0 0.0
    %72 = vmatpush1.msra.mxu0 %v42
    %73 = vmatprep.subr.mxu0 0.0
    %74 = vmatpush1.msra.mxu0 %v43
    %75 = vmatprep.subr.mxu0 0.0
    %76 = vmatpush1.msra.mxu0 %v44
    %77 = vmatprep.subr.mxu0 0.0
    %78 = vmatpush1.msra.mxu0 0.0
    %79 = vmatprep.subr.mxu0 0.0
    %80 = vmatpush1.msra.mxu0 0.0
    %81 = vmatprep.subr.mxu0 0.0
    %82 = vmatpush1.msra.mxu0 0.0
    %83 = vmatprep.subr.mxu0 0.0
    %84 = vmatpush1.msra.mxu0 0.0
    %85 = vmatprep.subr.mxu0 0.0
    %86 = vmatpush1.msra.mxu0 0.0
    %87 = vmatprep.subr.mxu0 0.0
    %88 = vmatpush1.msra.mxu0 0.0
    %89 = vmatprep.subr.mxu0 0.0
    %90 = vmatpush1.msra.mxu0 0.0
    %91 = vmatprep.subr.mxu0 0.0
    %92 = vmatpush1.msra.mxu0 0.0
    %93 = vmatprep.subr.mxu0 0.0
    %94 = vmatpush1.msra.mxu0 0.0
    %95 = vmatprep.subr.mxu0 0.0
    %96 = vmatpush1.msra.mxu0 0.0
    %97 = vmatprep.subr.mxu0 0.0
    %98 = vmatpush1.msra.mxu0 0.0
    %99 = vmatprep.subr.mxu0 0.0
    %100 = vmatpush1.msra.mxu0 0.0
    %101 = vmatprep.subr.mxu0 0.0
    %102 = vmatpush1.msra.mxu0 0.0
    %103 = vmatprep.subr.mxu0 0.0
    %104 = vmatpush1.msra.mxu0 0.0
    %105 = vmatprep.subr.mxu0 0.0
    %106 = vmatpush1.msra.mxu0 0.0
    %107 = vmatprep.subr.mxu0 0.0
    %108 = vmatpush1.msra.mxu0 0.0
    %109 = vmatprep.mubr.f32.mxu0 0.0
    %110 = vmatmul.mubr.f32.gmra.mrb[0].mxu0 %v27
    %v111 = vpop.f32.mrb[0].mxu0
    %v112 = vadd.f32 0.0, %v111
    %v113 = vpop.f32.mrb[0].mxu0
    %114 = vmatprep.mubr.f32.mxu0 0.0
    %115 = vmatmul.mubr.f32.gmra.mrb[0].mxu0 %v28
    %v116 = vpop.f32.mrb[0].mxu0
    %v117 = vadd.f32 0.0, %v116
    %v118 = vpop.f32.mrb[0].mxu0
    %119 = vdwg.mxu0
    %v120 = vadd.f32 %v25, %v112
    %v121 = vadd.f32 %v26, %v117
    %vm122 = vcmask 261120
    %123 = vst.msk [vmem:[#allocation2] sm:$0xff] %vm122, %v120
    %124 = vst.msk [vmem:[#allocation2 + $0x8] sm:$0xff] %vm122, %v121
    // Predicated region
    $region22: #{basic_transformer_block.17} parent=1 // pred_check
      %p125 = pneg %p18
    $region23: #{basic_transformer_block.17} parent=1 // pred_check_branch
      %127 = sbr.rel (%p125) target = $region25
    $region24: #{basic_transformer_block.17} parent=1 // pred_region
      %v128 = vld [vmem:[#allocation2] sm:$0xff]
      %v129 = vld [vmem:[#allocation2 + $0x8] sm:$0xff]
      %v130 = vld [vmem:[%s2] sm:$0x1]
      %v132 = vlaneseq
      %v133 = vshrl.u32 %v132, 7
      %v134 = vsub.s32 0, %v133
      %v135 = vrot.slane %v130, %v134
      %v137 = vadd.f32 %v128, %v135
      %v138 = vadd.f32 %v129, %v135
      %v139 = vld [vmem:[%s3] sm:$0xff]
      %v140 = vld [vmem:[%s3 + $0x8] sm:$0xff]
      %v141 = vadd.f32 %v137, %v139
      %v142 = vadd.f32 %v138, %v140
      %143 = vst.msk [vmem:[#allocation3] sm:$0xff] %vm122, %v141
      %144 = vst.msk [vmem:[#allocation3 + $0x8] sm:$0xff] %vm122, %v142
    $region25: #{basic_transformer_block.17} parent=1 // pred_fallthru
      _
    // Predicated region
    $region26: #{basic_transformer_block.17} parent=1 // pred_check
      _
    $region27: #{basic_transformer_block.17} parent=1 // pred_check_branch
      %146 = sbr.rel (0) target = $region29
    $region28: #{basic_transformer_block.17} parent=1 // pred_region
      %s148 = ssub.s32 256, 256
      %149 = vsyncadd [#allocation4], %s148
      %s150 = sshll.u32 [#allocation3], 4
      %s151 = int_to_ptr.vmem [resolvable:$true] %s150
      %156 = dma.vmem_to_hbm [thread:$0]  %s151, 256, %s4, [#allocation4], 128, 128, 8
    $region29: #{basic_transformer_block.17} parent=1 // pred_fallthru
      _
    // Predicated region
    $region30: #{basic_transformer_block.17} parent=1 // pred_check
      _
    $region31: #{basic_transformer_block.17} parent=1 // pred_check_branch
      %158 = sbr.rel (0) target = $region33
    $region32: #{basic_transformer_block.17} parent=1 // pred_region
      %159 = dma.done [#allocation4], 256
    $region33: #{basic_transformer_block.17} parent=1 // pred_fallthru
      _
    %160 = vsyncpa [#allocation4], 1

</llo_original>
